<compile_context>
chip_gen: v7x
topology: tpu7x:2x2x1
jax: 0.10.0
libtpu: 0.0.40
codegen_flags: <defaults>
</compile_context>

<pallas_src>
import functools

import jax
import jax.numpy as jnp
from jax import lax
from jax.experimental import pallas as pl
from jax.experimental.pallas import tpu as pltpu

EPS = 1e-5


def _round_up(x, m):
    return (x + m - 1) // m * m


# ---------------------------------------------------------------------------
# Pass 1: conv-as-matmul + ReLU + per-tile BN partial statistics.
#   grid = (M_pad // TILE_M, Kd_pad // TILE_K)
#   p_ref:     [TILE_M, TILE_K]  bf16   im2col patch tile
#   w_ref:     [TILE_K, C_pad]   bf16   weight tile (Kd x Cout, lane-padded)
#   y_ref:     [TILE_M, C_pad]   f32    relu(conv) activation tile     (output 0)
#   stats_ref: [1, 2, C_pad]     f32    per-M-tile (sum, sum of squares) (output 1)
#   acc_ref:   [TILE_M, C_pad]   f32    VMEM accumulator scratch
# ---------------------------------------------------------------------------
def conv_relu_stats_kernel(p_ref, w_ref, y_ref, stats_ref, acc_ref):
    k = pl.program_id(1)

    @pl.when(k == 0)
    def _init():
        acc_ref[...] = jnp.zeros_like(acc_ref)

    acc_ref[...] += jnp.dot(p_ref[...], w_ref[...],
                            preferred_element_type=jnp.float32)

    @pl.when(k == pl.num_programs(1) - 1)
    def _finalize():
        y = jnp.maximum(acc_ref[...], 0.0)                       # ReLU in f32
        y_ref[...] = y.astype(y_ref.dtype)
        # one-pass BN statistics (var = E[y^2] - mean^2 computed later in f32)
        stats_ref[0, 0:1, :] = jnp.sum(y, axis=0, keepdims=True)
        stats_ref[0, 1:2, :] = jnp.sum(y * y, axis=0, keepdims=True)


# ---------------------------------------------------------------------------
# Pass 2: apply precomputed per-channel scale/shift:  out = y * scale + shift
# ---------------------------------------------------------------------------
def bn_apply_kernel(y_ref, scale_ref, shift_ref, o_ref):
    o_ref[...] = (y_ref[...] * scale_ref[...] + shift_ref[...]).astype(o_ref.dtype)


def _im2col_nhwc(x_nhwc, kh, kw, stride, padding, dilation):
    N, H, W, Cin = x_nhwc.shape
    Hout = (H + 2 * padding - dilation * (kh - 1) - 1) // stride + 1
    Wout = (W + 2 * padding - dilation * (kw - 1) - 1) // stride + 1
    xp = jnp.pad(x_nhwc, ((0, 0), (padding, padding), (padding, padding), (0, 0)))
    cols = []
    for i in range(kh):
        for j in range(kw):
            hi = i * dilation
            wj = j * dilation
            patch = xp[:, hi:hi + (Hout - 1) * stride + 1:stride,
                          wj:wj + (Wout - 1) * stride + 1:stride, :]
            cols.append(patch)                                  # [N, Hout, Wout, Cin]
    patches = jnp.stack(cols, axis=3)                           # [N, Hout, Wout, Kh*Kw, Cin]
    patches = patches.reshape(N * Hout * Wout, kh * kw * Cin)
    return patches, Hout, Wout


@functools.partial(jax.jit,
                   static_argnames=("stride", "padding", "dilation", "tile_m", "tile_k"))
def basic_conv2d(x_nchw, weight_oihw, gamma, beta, *, stride=1, padding=0,
                 dilation=1, tile_m=256, tile_k=128):
    """Forward of BasicConv2d: conv(no bias) -> relu -> batchnorm (batch stats)."""
    N, Cin, H, W = x_nchw.shape
    Cout, _, Kh, Kw = weight_oihw.shape

    # im2col in bf16 (halves the slab bytes and feeds the MXU its native dtype).
    # NOTE: this still materializes a Kh*Kw-inflated operand in HBM; a further
    # optimization is streaming x_nhwc and accumulating Kh*Kw shifted matmuls in-kernel.
    x_nhwc = jnp.transpose(x_nchw, (0, 2, 3, 1)).astype(jnp.bfloat16)
    patches, Hout, Wout = _im2col_nhwc(x_nhwc, Kh, Kw, stride, padding, dilation)
    M, Kd = patches.shape

    # Pad to TPU-friendly shapes: lane-dense Cout (128), tileable M / Kd.
    c_pad = _round_up(Cout, 128)
    m_pad = _round_up(M, tile_m)
    kd_pad = _round_up(Kd, tile_k)

    patches = jnp.pad(patches, ((0, m_pad - M), (0, kd_pad - Kd)))
    w_mat = jnp.transpose(weight_oihw, (2, 3, 1, 0)).reshape(Kd, Cout)
    w_mat = jnp.pad(w_mat, ((0, kd_pad - Kd), (0, c_pad - Cout))).astype(jnp.bfloat16)

    n_m = m_pad // tile_m
    n_k = kd_pad // tile_k

    # --- pass 1: conv + relu + partial BN stats -----------------------------
    y, stats = pl.pallas_call(
        conv_relu_stats_kernel,
        grid_spec=pltpu.PrefetchScalarGridSpec(
            num_scalar_prefetch=0,
            grid=(n_m, n_k),
            in_specs=[
                pl.BlockSpec((tile_m, tile_k), lambda i, k: (i, k)),
                pl.BlockSpec((tile_k, c_pad), lambda i, k: (k, 0)),
            ],
            out_specs=[
                pl.BlockSpec((tile_m, c_pad), lambda i, k: (i, 0)),
                pl.BlockSpec((1, 2, c_pad), lambda i, k: (i, 0, 0)),
            ],
            scratch_shapes=[pltpu.VMEM((tile_m, c_pad), jnp.float32)],
        ),
        out_shape=[
            jax.ShapeDtypeStruct((m_pad, c_pad), jnp.float32),
            jax.ShapeDtypeStruct((n_m, 2, c_pad), jnp.float32),
        ],
        compiler_params=pltpu.CompilerParams(
            dimension_semantics=("parallel", "arbitrary"),
            vmem_limit_bytes=32 * 1024 * 1024),
    )(patches, w_mat)

    # --- tiny cross-tile stat reduction + BN fold (O(C) work, left in XLA) ---
    # Zero-padded M rows produce y == relu(0) == 0 and contribute 0 to both sums,
    # so dividing by the true M gives exact (biased) batch statistics.
    tot = jnp.sum(stats, axis=0)                                 # [2, C_pad]
    inv_m = 1.0 / float(M)
    mean = tot[0] * inv_m
    var = jnp.maximum(tot[1] * inv_m - mean * mean, 0.0)
    rstd = lax.rsqrt(var + EPS)
    gamma_p = jnp.pad(gamma.astype(jnp.float32), (0, c_pad - Cout))
    beta_p = jnp.pad(beta.astype(jnp.float32), (0, c_pad - Cout))
    scale = (gamma_p * rstd).reshape(1, c_pad)
    shift = (beta_p - mean * gamma_p * rstd).reshape(1, c_pad)
    # TODO(synk): BatchNorm running_mean/running_var updates (module training-state
    # side effect) are not modeled; only the returned tensor matches PyTorch.

    # --- pass 2: normalize (y * scale + shift) per M tile --------------------
    out = pl.pallas_call(
        bn_apply_kernel,
        grid_spec=pltpu.PrefetchScalarGridSpec(
            num_scalar_prefetch=0,
            grid=(n_m,),
            in_specs=[
                pl.BlockSpec((tile_m, c_pad), lambda i: (i, 0)),
                pl.BlockSpec((1, c_pad), lambda i: (0, 0)),
                pl.BlockSpec((1, c_pad), lambda i: (0, 0)),
            ],
            out_specs=pl.BlockSpec((tile_m, c_pad), lambda i: (i, 0)),
        ),
        out_shape=jax.ShapeDtypeStruct((m_pad, c_pad), jnp.float32),
        compiler_params=pltpu.CompilerParams(
            dimension_semantics=("parallel",),
            vmem_limit_bytes=32 * 1024 * 1024),
    )(y, scale, shift)

    out = out[:M, :Cout].reshape(N, Hout, Wout, Cout)
    return jnp.transpose(out, (0, 3, 1, 2))                      # back to NCHW


def _reference(x_nchw, weight_oihw, gamma, beta, stride, padding, dilation):
    # Reference uses the same bf16-rounded conv inputs as the kernel's MXU feed;
    # all math is f32, so differences are only f32 reassociation.
    x = x_nchw.astype(jnp.bfloat16).astype(jnp.float32)
    w = weight_oihw.astype(jnp.bfloat16).astype(jnp.float32)
    y = lax.conv_general_dilated(
        x, w, window_strides=(stride, stride),
        padding=((padding, padding), (padding, padding)),
        rhs_dilation=(dilation, dilation),
        dimension_numbers=("NCHW", "OIHW", "NCHW"))
    y = jnp.maximum(y, 0.0)
    mean = jnp.mean(y, axis=(0, 2, 3), keepdims=True)
    var = jnp.mean(jnp.square(y - mean), axis=(0, 2, 3), keepdims=True)
    return ((y - mean) * lax.rsqrt(var + EPS) * gamma.reshape(1, -1, 1, 1)
            + beta.reshape(1, -1, 1, 1))


if __name__ == "__main__":
    # module config: BasicConv2d(in_planes=4, out_planes=8, kernel_size=3, stride=1, padding=1)
    N, Cin, H, W = 2, 4, 16, 16
    Cout, K = 8, 3
    stride, padding, dilation = 1, 1, 1

    key = jax.random.PRNGKey(0)
    kx, kw, kg, kb = jax.random.split(key, 4)
    x = jax.random.normal(kx, (N, Cin, H, W), dtype=jnp.float32)
    weight = jax.random.normal(kw, (Cout, Cin, K, K), dtype=jnp.float32) * 0.1  # conv weight, no bias
    gamma = 1.0 + 0.1 * jax.random.normal(kg, (Cout,), dtype=jnp.float32)       # bn weight
    beta = 0.1 * jax.random.normal(kb, (Cout,), dtype=jnp.float32)              # bn bias

    out = basic_conv2d(x, weight, gamma, beta, stride=stride, padding=padding, dilation=dilation)
    out = jax.block_until_ready(out)

    ref = _reference(x, weight, gamma, beta, stride, padding, dilation)
    assert out.shape == (N, Cout, H, W), out.shape
    err = float(jnp.max(jnp.abs(out - ref)))
    assert jnp.allclose(out, ref, atol=1e-3, rtol=1e-3), err  # covers f32 reassociation + one-pass var
    print("KERNEL_OK")
</pallas_src>

<mosaic_0001>
module attributes {stable_mosaic.version = 11 : i64} {
  func.func @conv_relu_stats_kernel(%arg0: i32, %arg1: i32, %arg2: memref<256x128xbf16, #tpu.memory_space<vmem>>, %arg3: memref<128x128xbf16, #tpu.memory_space<vmem>>, %arg4: memref<256x128xf32, #tpu.memory_space<vmem>>, %arg5: memref<1x2x128xf32, #tpu.memory_space<vmem>>, %arg6: memref<256x128xf32, #tpu.memory_space<vmem>>) attributes {dimension_semantics = [#tpu.dimension_semantics<parallel>, #tpu.dimension_semantics<arbitrary>], iteration_bounds = array<i64: 2, 1>, scalar_prefetch = 0 : i64, scratch_operands = 1 : i64, tpu.core_type = #tpu.core_type<tc>, window_params = [{transform_indices = @transform_0, window_bounds = array<i64: 256, 128>}, {transform_indices = @transform_1, window_bounds = array<i64: 128, 128>}, {transform_indices = @transform_2, window_bounds = array<i64: 256, 128>}, {transform_indices = @transform_3, window_bounds = array<i64: 1, 2, 128>}]} {
    %c0_i32 = arith.constant 0 : i32
    %0 = arith.cmpi eq, %arg1, %c0_i32 : i32
    %1 = arith.extui %0 : i1 to i32
    %c0_i32_0 = arith.constant 0 : i32
    %2 = arith.cmpi ne, %1, %c0_i32_0 : i32
    scf.if %2 {
      %cst_10 = arith.constant 0.000000e+00 : f32
      %12 = vector.broadcast %cst_10 : f32 to vector<256x128xf32>
      %c0_11 = arith.constant 0 : index
      %c0_12 = arith.constant 0 : index
      %13 = vector.load %arg6[%c0_11, %c0_12] : memref<256x128xf32, #tpu.memory_space<vmem>>, vector<256x128xf32>
      tpu.vector_store %arg6[%c0_11, %c0_12], %12 {strides = array<i32>} : memref<256x128xf32, #tpu.memory_space<vmem>>, vector<256x128xf32>,
    } else {
    }
    %c0 = arith.constant 0 : index
    %c0_1 = arith.constant 0 : index
    %3 = vector.load %arg6[%c0, %c0_1] : memref<256x128xf32, #tpu.memory_space<vmem>>, vector<256x128xf32>
    %c0_2 = arith.constant 0 : index
    %c0_3 = arith.constant 0 : index
    %4 = vector.load %arg2[%c0_2, %c0_3] : memref<256x128xbf16, #tpu.memory_space<vmem>>, vector<256x128xbf16>
    %c0_4 = arith.constant 0 : index
    %c0_5 = arith.constant 0 : index
    %5 = vector.load %arg3[%c0_4, %c0_5] : memref<128x128xbf16, #tpu.memory_space<vmem>>, vector<128x128xbf16>
    %cst = arith.constant dense<0.000000e+00> : vector<256x128xf32>
    %6 = tpu.matmul %4, %5, %cst {dimension_numbers = #tpu.dot_dimension_numbers<[1], [0], [0], [1], [0, 0, 1, 1], [], []>} : vector<256x128xbf16>, vector<128x128xbf16>, vector<256x128xf32> -> vector<256x128xf32>
    %7 = arith.addf %3, %6 : vector<256x128xf32>
    %c0_6 = arith.constant 0 : index
    %c0_7 = arith.constant 0 : index
    %8 = vector.load %arg6[%c0_6, %c0_7] : memref<256x128xf32, #tpu.memory_space<vmem>>, vector<256x128xf32>
    tpu.vector_store %arg6[%c0_6, %c0_7], %7 {strides = array<i32>} : memref<256x128xf32, #tpu.memory_space<vmem>>, vector<256x128xf32>,
    %c0_i32_8 = arith.constant 0 : i32
    %9 = arith.cmpi eq, %arg1, %c0_i32_8 : i32
    %10 = arith.extui %9 : i1 to i32
    %c0_i32_9 = arith.constant 0 : i32
    %11 = arith.cmpi ne, %10, %c0_i32_9 : i32
    scf.if %11 {
      %c0_10 = arith.constant 0 : index
      %c0_11 = arith.constant 0 : index
      %12 = vector.load %arg6[%c0_10, %c0_11] : memref<256x128xf32, #tpu.memory_space<vmem>>, vector<256x128xf32>
      %cst_12 = arith.constant 0.000000e+00 : f32
      %13 = vector.broadcast %cst_12 : f32 to vector<256x128xf32>
      %14 = arith.maximumf %12, %13 : vector<256x128xf32>
      %c0_13 = arith.constant 0 : index
      %c0_14 = arith.constant 0 : index
      %15 = vector.load %arg4[%c0_13, %c0_14] : memref<256x128xf32, #tpu.memory_space<vmem>>, vector<256x128xf32>
      tpu.vector_store %arg4[%c0_13, %c0_14], %14 {strides = array<i32>} : memref<256x128xf32, #tpu.memory_space<vmem>>, vector<256x128xf32>,
      %cst_15 = arith.constant dense<0.000000e+00> : vector<128xf32>
      %16 = vector.multi_reduction <add>, %14, %cst_15 [0] : vector<256x128xf32> to vector<128xf32>
      %17 = vector.shape_cast %16 : vector<128xf32> to vector<1x128xf32>
      %c0_16 = arith.constant 0 : index
      %c0_17 = arith.constant 0 : index
      %c0_18 = arith.constant 0 : index
      %18 = vector.load %arg5[%c0_16, %c0_17, %c0_18] : memref<1x2x128xf32, #tpu.memory_space<vmem>>, vector<1x1x128xf32>
      %19 = vector.shape_cast %18 : vector<1x1x128xf32> to vector<1x128xf32>
      %20 = vector.shape_cast %17 : vector<1x128xf32> to vector<1x1x128xf32>
      tpu.vector_store %arg5[%c0_16, %c0_17, %c0_18], %20 {strides = array<i32>} : memref<1x2x128xf32, #tpu.memory_space<vmem>>, vector<1x1x128xf32>,
      %21 = arith.mulf %14, %14 : vector<256x128xf32>
      %cst_19 = arith.constant dense<0.000000e+00> : vector<128xf32>
      %22 = vector.multi_reduction <add>, %21, %cst_19 [0] : vector<256x128xf32> to vector<128xf32>
      %23 = vector.shape_cast %22 : vector<128xf32> to vector<1x128xf32>
      %c0_20 = arith.constant 0 : index
      %c1 = arith.constant 1 : index
      %c0_21 = arith.constant 0 : index
      %24 = vector.load %arg5[%c0_20, %c1, %c0_21] : memref<1x2x128xf32, #tpu.memory_space<vmem>>, vector<1x1x128xf32>
      %25 = vector.shape_cast %24 : vector<1x1x128xf32> to vector<1x128xf32>
      %26 = vector.shape_cast %23 : vector<1x128xf32> to vector<1x1x128xf32>
      tpu.vector_store %arg5[%c0_20, %c1, %c0_21], %26 {strides = array<i32>} : memref<1x2x128xf32, #tpu.memory_space<vmem>>, vector<1x1x128xf32>,
    } else {
    }
    return
  }
  func.func @transform_0(%arg0: i32, %arg1: i32) -> (i32, i32) {
    %c0_i32 = arith.constant 0 : i32
    return %arg0, %arg1 : i32, i32
  }
  func.func @transform_1(%arg0: i32, %arg1: i32) -> (i32, i32) {
    %c0_i32 = arith.constant 0 : i32
    %c0_i32_0 = arith.constant 0 : i32
    return %arg1, %c0_i32 : i32, i32
  }
  func.func @transform_2(%arg0: i32, %arg1: i32) -> (i32, i32) {
    %c0_i32 = arith.constant 0 : i32
    %c0_i32_0 = arith.constant 0 : i32
    return %arg0, %c0_i32 : i32, i32
  }
  func.func @transform_3(%arg0: i32, %arg1: i32) -> (i32, i32, i32) {
    %c0_i32 = arith.constant 0 : i32
    %c0_i32_0 = arith.constant 0 : i32
    %c0_i32_1 = arith.constant 0 : i32
    return %arg0, %c0_i32, %c0_i32_0 : i32, i32, i32
  }
}

module attributes {stable_mosaic.version = 11 : i64} {
  func.func @bn_apply_kernel(%arg0: i32, %arg1: memref<256x128xf32, #tpu.memory_space<vmem>>, %arg2: memref<1x128xf32, #tpu.memory_space<vmem>>, %arg3: memref<1x128xf32, #tpu.memory_space<vmem>>, %arg4: memref<256x128xf32, #tpu.memory_space<vmem>>) attributes {dimension_semantics = [#tpu.dimension_semantics<parallel>], iteration_bounds = array<i64: 2>, scalar_prefetch = 0 : i64, scratch_operands = 0 : i64, tpu.core_type = #tpu.core_type<tc>, window_params = [{transform_indices = @transform_0, window_bounds = array<i64: 256, 128>}, {pipeline_mode = #tpu.pipeline_mode<synchronous>, transform_indices = @transform_1, window_bounds = array<i64: 1, 128>}, {pipeline_mode = #tpu.pipeline_mode<synchronous>, transform_indices = @transform_2, window_bounds = array<i64: 1, 128>}, {transform_indices = @transform_3, window_bounds = array<i64: 256, 128>}]} {
    %c0 = arith.constant 0 : index
    %c0_0 = arith.constant 0 : index
    %0 = vector.load %arg1[%c0, %c0_0] : memref<256x128xf32, #tpu.memory_space<vmem>>, vector<256x128xf32>
    %c0_1 = arith.constant 0 : index
    %c0_2 = arith.constant 0 : index
    %1 = vector.load %arg2[%c0_1, %c0_2] : memref<1x128xf32, #tpu.memory_space<vmem>>, vector<1x128xf32>
    %2 = vector.broadcast %1 : vector<1x128xf32> to vector<256x128xf32>
    %3 = arith.mulf %0, %2 : vector<256x128xf32>
    %c0_3 = arith.constant 0 : index
    %c0_4 = arith.constant 0 : index
    %4 = vector.load %arg3[%c0_3, %c0_4] : memref<1x128xf32, #tpu.memory_space<vmem>>, vector<1x128xf32>
    %5 = vector.broadcast %4 : vector<1x128xf32> to vector<256x128xf32>
    %6 = arith.addf %3, %5 : vector<256x128xf32>
    %c0_5 = arith.constant 0 : index
    %c0_6 = arith.constant 0 : index
    %7 = vector.load %arg4[%c0_5, %c0_6] : memref<256x128xf32, #tpu.memory_space<vmem>>, vector<256x128xf32>
    tpu.vector_store %arg4[%c0_5, %c0_6], %6 {strides = array<i32>} : memref<256x128xf32, #tpu.memory_space<vmem>>, vector<256x128xf32>,
    return
  }
  func.func @transform_0(%arg0: i32) -> (i32, i32) {
    %c0_i32 = arith.constant 0 : i32
    %c0_i32_0 = arith.constant 0 : i32
    return %arg0, %c0_i32 : i32, i32
  }
  func.func @transform_1(%arg0: i32) -> (i32, i32) {
    %c0_i32 = arith.constant 0 : i32
    %c0_i32_0 = arith.constant 0 : i32
    %c0_i32_1 = arith.constant 0 : i32
    return %c0_i32, %c0_i32_0 : i32, i32
  }
  func.func @transform_2(%arg0: i32) -> (i32, i32) {
    %c0_i32 = arith.constant 0 : i32
    %c0_i32_0 = arith.constant 0 : i32
    %c0_i32_1 = arith.constant 0 : i32
    return %c0_i32, %c0_i32_0 : i32, i32
  }
  func.func @transform_3(%arg0: i32) -> (i32, i32) {
    %c0_i32 = arith.constant 0 : i32
    %c0_i32_0 = arith.constant 0 : i32
    return %arg0, %c0_i32 : i32, i32
  }
}

</mosaic_0001>

<llo_original>
// kernel: basic_conv2d.3
$region0: #{basic_conv2d.3}
  #allocation0 [shape = 'u32[]', space=smem, size = 0x4, offset = 0x4, fixed_abs, tag = 'smem constant byte address 0x4 - core index']
  #allocation1 [shape = 'u32[144,128]{1,0:T(1,128)}', space=vmem, size = 0x12000, scoped, tag = 'internal scratch']
  %s0 = inlined_call_operand.vmem [shape: f32[512,128], index: 0, kind: input, shape index: {}]
  %s1 = inlined_call_operand.vmem [shape: f32[1,128], index: 1, kind: input, shape index: {}]
  %s2 = inlined_call_operand.vmem [shape: f32[1,128], index: 2, kind: input, shape index: {}]
  %s3 = inlined_call_operand.vmem [shape: f32[512,128], index: 3, kind: output, shape index: {}]
  %s4 = sld [smem:[#allocation0]]
  $region45: #{basic_conv2d.3} parent=0
    _
  %s6 = ssub.s32 1, %s4
  %s7 = scalar_select 0, %s6, %s4
  loop: start=0, step=1, limit=4
  $region2: #{basic_conv2d.3} parent=0 // loop_pre_header
    _
  $region3: #{basic_conv2d.3} parent=0 // loop_header
    %s9 = sphi 0, %s13
    %p10 = scmp.ge.s32.totalorder %s9, 4
    %s19 = sphi 0, %s21
    %s22 = sphi 0, %s19
    %s23 = sphi 0, %s22
    %s39 = sphi 0, %s23
    %s43 = sphi 0, %s43
    %s45 = sphi 0, %s43
    %s46 = sphi 0, %s45
    %s60 = sphi 0, %s46
    %s64 = sphi 0, %s64
    %s66 = sphi 0, %s64
    %s67 = sphi 0, %s66
    %s81 = sphi 0, %s67
    %s87 = sphi 0, %s89
    %s90 = sphi 0, %s87
    %s91 = sphi 0, %s90
    %s107 = sphi 0, %s91
  $region4: #{basic_conv2d.3} parent=0 // loop_header_branch
    %12 = sbr.rel (%p10) target = $region8
  $region5: #{basic_conv2d.3} parent=0 // loop_body
    %s14 = ssub.s32 %s9, 1
    %s15 = ssub.s32 %s9, 2
    %s16 = sadd.s32 %s9, 1
    %s17 = ssub.s32 %s9, %s16
    %p18 = scmp.eq.s32.totalorder %s17, 0
    %s20 = sadd.s32 %s19, 1
    %s21 = scalar_select %p18, %s19, %s20
    %p24 = pneg %p18
    %p25 = scmp.eq.s32.totalorder %s9, 1
    %p26 = por %p24, %p25
    %p27 = scmp.ne.s32.totalorder %s19, %s22
    %p28 = scmp.eq.s32.totalorder %s9, 0
    %p29 = por %p27, %p28
    %p30 = scmp.ne.s32.totalorder %s19, %s22
    %p31 = scmp.eq.s32.totalorder %s14, 1
    %p32 = por %p30, %p31
    %p33 = scmp.ne.s32.totalorder %s22, %s23
    %p34 = scmp.eq.s32.totalorder %s14, 0
    %p35 = por %p33, %p34
    %p36 = scmp.ne.s32.totalorder %s22, %s23
    %p37 = scmp.eq.s32.totalorder %s15, 1
    %p38 = por %p36, %p37
    %p40 = scmp.ne.s32.totalorder %s23, %s39
    %p41 = scmp.eq.s32.totalorder %s15, 0
    %p42 = por %p40, %p41
    %s44 = sadd.s32 %s43, 1
    %p47 = scmp.eq.s32.totalorder %s9, 1
    %p48 = scmp.ne.s32.totalorder %s43, %s45
    %p49 = scmp.eq.s32.totalorder %s9, 0
    %p50 = por %p48, %p49
    %p51 = scmp.ne.s32.totalorder %s43, %s45
    %p52 = scmp.eq.s32.totalorder %s14, 1
    %p53 = por %p51, %p52
    %p54 = scmp.ne.s32.totalorder %s45, %s46
    %p55 = scmp.eq.s32.totalorder %s14, 0
    %p56 = por %p54, %p55
    %p57 = scmp.ne.s32.totalorder %s45, %s46
    %p58 = scmp.eq.s32.totalorder %s15, 1
    %p59 = por %p57, %p58
    %p61 = scmp.ne.s32.totalorder %s46, %s60
    %p62 = scmp.eq.s32.totalorder %s15, 0
    %p63 = por %p61, %p62
    %s65 = sadd.s32 %s64, 1
    %p68 = scmp.eq.s32.totalorder %s9, 1
    %p69 = scmp.ne.s32.totalorder %s64, %s66
    %p70 = scmp.eq.s32.totalorder %s9, 0
    %p71 = por %p69, %p70
    %p72 = scmp.ne.s32.totalorder %s64, %s66
    %p73 = scmp.eq.s32.totalorder %s14, 1
    %p74 = por %p72, %p73
    %p75 = scmp.ne.s32.totalorder %s66, %s67
    %p76 = scmp.eq.s32.totalorder %s14, 0
    %p77 = por %p75, %p76
    %p78 = scmp.ne.s32.totalorder %s66, %s67
    %p79 = scmp.eq.s32.totalorder %s15, 1
    %p80 = por %p78, %p79
    %p82 = scmp.ne.s32.totalorder %s67, %s81
    %p83 = scmp.eq.s32.totalorder %s15, 0
    %p84 = por %p82, %p83
    %s85 = ssub.s32 %s9, %s16
    %p86 = scmp.eq.s32.totalorder %s85, 0
    %s88 = sadd.s32 %s87, 1
    %s89 = scalar_select %p86, %s87, %s88
    %p92 = pneg %p86
    %p93 = scmp.eq.s32.totalorder %s9, 1
    %p94 = por %p92, %p93
    %p95 = scmp.ne.s32.totalorder %s87, %s90
    %p96 = scmp.eq.s32.totalorder %s9, 0
    %p97 = por %p95, %p96
    %p98 = scmp.ne.s32.totalorder %s87, %s90
    %p99 = scmp.eq.s32.totalorder %s14, 1
    %p100 = por %p98, %p99
    %p101 = scmp.ne.s32.totalorder %s90, %s91
    %p102 = scmp.eq.s32.totalorder %s14, 0
    %p103 = por %p101, %p102
    %p104 = scmp.ne.s32.totalorder %s90, %s91
    %p105 = scmp.eq.s32.totalorder %s15, 1
    %p106 = por %p104, %p105
    %p108 = scmp.ne.s32.totalorder %s91, %s107
    %p109 = scmp.eq.s32.totalorder %s15, 0
    %p110 = por %p108, %p109
    %p111 = scmp.le.s32.totalorder 1, %s9
    %p112 = scmp.lt.s32.totalorder %s9, 3
    %p113 = pnand %p111, %p112
    %p114 = pneg %p113
    // Predicated region
    $region9: #{basic_conv2d.3} parent=5 // pred_check
      _
    $region10: #{basic_conv2d.3} parent=5 // pred_check_branch
      %116 = sbr.rel (%p113) target = $region12
    $region11: #{basic_conv2d.3} parent=5 // pred_region
      %s117 = ssub.s32 %s9, 1
      // Predicated region
      $region13: #{basic_conv2d.3} parent=11 // pred_check
        %p118 = pneg %p56
      $region14: #{basic_conv2d.3} parent=11 // pred_check_branch
        %120 = sbr.rel (%p118) target = $region16
      $region15: #{basic_conv2d.3} parent=11 // pred_region
        _
      $region16: #{basic_conv2d.3} parent=11 // pred_fallthru
        _
      // Predicated region
      $region17: #{basic_conv2d.3} parent=11 // pred_check
        %p121 = pneg %p77
      $region18: #{basic_conv2d.3} parent=11 // pred_check_branch
        %123 = sbr.rel (%p121) target = $region20
      $region19: #{basic_conv2d.3} parent=11 // pred_region
        _
      $region20: #{basic_conv2d.3} parent=11 // pred_fallthru
        _
    $region12: #{basic_conv2d.3} parent=5 // pred_fallthru
      _
    %p124 = scmp.lt.s32.totalorder %s9, 2
    // Predicated region
    $region21: #{basic_conv2d.3} parent=5 // pred_check
      %p125 = pneg %p124
    $region22: #{basic_conv2d.3} parent=5 // pred_check_branch
      %127 = sbr.rel (%p125) target = $region24
    $region23: #{basic_conv2d.3} parent=5 // pred_region
      // Predicated region
      $region25: #{basic_conv2d.3} parent=23 // pred_check
        %p128 = pneg %p29
      $region26: #{basic_conv2d.3} parent=23 // pred_check_branch
        %130 = sbr.rel (%p128) target = $region28
      $region27: #{basic_conv2d.3} parent=23 // pred_region
        %s131 = smul.u32 32, %s9
        %p132 = scmp.lt.s32.totalorder %s131, 63
        %s133 = scalar_select %p132, %s131, 63
        %s134 = smul.addr %s133, 8
        %s135 = scalar_lea.vmem %s0, %s134
        %s136 = smul.u32 32, %s9
      $region28: #{basic_conv2d.3} parent=23 // pred_fallthru
        _
    $region24: #{basic_conv2d.3} parent=5 // pred_fallthru
      _
    %p137 = scmp.le.s32.totalorder 1, %s9
    %p138 = scmp.lt.s32.totalorder %s9, 3
    %p139 = pnand %p137, %p138
    %p140 = pneg %p139
    // Predicated region
    $region29: #{basic_conv2d.3} parent=5 // pred_check
      _
    $region30: #{basic_conv2d.3} parent=5 // pred_check_branch
      %142 = sbr.rel (%p139) target = $region32
    $region31: #{basic_conv2d.3} parent=5 // pred_region
      %s143 = ssub.s32 %s9, 1
      %s144 = smul.u32 32, %s14
      %p145 = scmp.lt.s32.totalorder %s144, 63
      %s146 = scalar_select %p145, %s144, 63
      %s147 = smul.addr %s146, 8
      %s148 = scalar_lea.vmem %s0, %s147
      %p149 = pneg %p35
      %p150 = pneg %p32
      %p151 = pneg %p56
      %p152 = pneg %p53
      %p153 = pneg %p77
      %p154 = pneg %p74
      %p155 = pneg %p103
      %p156 = pneg %p100
      %s157 = smul.u32 32, %s14
      %p158 = scmp.lt.s32.totalorder %s157, 63
      %s159 = scalar_select %p158, %s157, 63
      %s160 = smul.addr %s159, 8
      %s161 = scalar_lea.vmem %s3, %s160
      %s162 = smul.u32 32, %s14
      %p163 = scmp.lt.s32.totalorder %s162, 63
      %s164 = scalar_select %p163, %s162, 63
      %s165 = smul.addr %s164, 8
      %s166 = scalar_lea.vmem %s0, %s165
      %s167 = smul.u32 32, %s14
      %s168 = smul.u32 32, %s14
      %p169 = scmp.lt.s32.totalorder %s168, 63
      %s170 = scalar_select %p169, %s168, 63
      %s171 = smul.addr %s170, 8
      %s172 = scalar_lea.vmem %s3, %s171
      %s173 = smul.u32 32, %s14
      %v174 = vld [vmem:[%s166] sm:$0xff]
      %v175 = vld [vmem:[%s166 + $0x8] sm:$0xff]
      %v176 = vld [vmem:[%s166 + $0x10] sm:$0xff]
      %v177 = vld [vmem:[%s166 + $0x18] sm:$0xff]
      %v178 = vld [vmem:[%s166 + $0x20] sm:$0xff]
      %v179 = vld [vmem:[%s166 + $0x28] sm:$0xff]
      %v180 = vld [vmem:[%s166 + $0x30] sm:$0xff]
      %v181 = vld [vmem:[%s166 + $0x38] sm:$0xff]
      %v182 = vld [vmem:[%s166 + $0x40] sm:$0xff]
      %v183 = vld [vmem:[%s166 + $0x48] sm:$0xff]
      %v184 = vld [vmem:[%s166 + $0x50] sm:$0xff]
      %v185 = vld [vmem:[%s166 + $0x58] sm:$0xff]
      %v186 = vld [vmem:[%s166 + $0x60] sm:$0xff]
      %v187 = vld [vmem:[%s166 + $0x68] sm:$0xff]
      %v188 = vld [vmem:[%s166 + $0x70] sm:$0xff]
      %v189 = vld [vmem:[%s166 + $0x78] sm:$0xff]
      %v190 = vld [vmem:[%s166 + $0x80] sm:$0xff]
      %v191 = vld [vmem:[%s166 + $0x88] sm:$0xff]
      %v192 = vld [vmem:[%s166 + $0x90] sm:$0xff]
      %v193 = vld [vmem:[%s166 + $0x98] sm:$0xff]
      %v194 = vld [vmem:[%s166 + $0xa0] sm:$0xff]
      %v195 = vld [vmem:[%s166 + $0xa8] sm:$0xff]
      %v196 = vld [vmem:[%s166 + $0xb0] sm:$0xff]
      %v197 = vld [vmem:[%s166 + $0xb8] sm:$0xff]
      %v198 = vld [vmem:[%s166 + $0xc0] sm:$0xff]
      %v199 = vld [vmem:[%s166 + $0xc8] sm:$0xff]
      %v200 = vld [vmem:[%s166 + $0xd0] sm:$0xff]
      %v201 = vld [vmem:[%s166 + $0xd8] sm:$0xff]
      %v202 = vld [vmem:[%s166 + $0xe0] sm:$0xff]
      %v203 = vld [vmem:[%s166 + $0xe8] sm:$0xff]
      %v204 = vld [vmem:[%s166 + $0xf0] sm:$0xff]
      %v205 = vld [vmem:[%s166 + $0xf8] sm:$0xff]
      %v206 = vld [vmem:[%s1] sm:$0x1]
      %v208 = vlaneseq
      %v209 = vshrl.u32 %v208, 7
      %v210 = vsub.s32 0, %v209
      %v211 = vrot.slane %v206, %v210
      %v213 = vmul.f32 %v174, %v211
      %v214 = vmul.f32 %v175, %v211
      %v215 = vmul.f32 %v176, %v211
      %v216 = vmul.f32 %v177, %v211
      %v217 = vmul.f32 %v178, %v211
      %v218 = vmul.f32 %v179, %v211
      %v219 = vmul.f32 %v180, %v211
      %v220 = vmul.f32 %v181, %v211
      %v221 = vmul.f32 %v182, %v211
      %v222 = vmul.f32 %v183, %v211
      %v223 = vmul.f32 %v184, %v211
      %v224 = vmul.f32 %v185, %v211
      %v225 = vmul.f32 %v186, %v211
      %v226 = vmul.f32 %v187, %v211
      %v227 = vmul.f32 %v188, %v211
      %v228 = vmul.f32 %v189, %v211
      %v229 = vmul.f32 %v190, %v211
      %v230 = vmul.f32 %v191, %v211
      %v231 = vmul.f32 %v192, %v211
      %v232 = vmul.f32 %v193, %v211
      %v233 = vmul.f32 %v194, %v211
      %v234 = vmul.f32 %v195, %v211
      %v235 = vmul.f32 %v196, %v211
      %v236 = vmul.f32 %v197, %v211
      %v237 = vmul.f32 %v198, %v211
      %v238 = vmul.f32 %v199, %v211
      %v239 = vmul.f32 %v200, %v211
      %v240 = vmul.f32 %v201, %v211
      %v241 = vmul.f32 %v202, %v211
      %v242 = vmul.f32 %v203, %v211
      %v243 = vmul.f32 %v204, %v211
      %v244 = vmul.f32 %v205, %v211
      %v245 = vld [vmem:[%s2] sm:$0x1]
      %v247 = vlaneseq
      %v248 = vshrl.u32 %v247, 7
      %v249 = vsub.s32 0, %v248
      %v250 = vrot.slane %v245, %v249
      %v252 = vadd.f32 %v213, %v250
      %v253 = vadd.f32 %v214, %v250
      %v254 = vadd.f32 %v215, %v250
      %v255 = vadd.f32 %v216, %v250
      %v256 = vadd.f32 %v217, %v250
      %v257 = vadd.f32 %v218, %v250
      %v258 = vadd.f32 %v219, %v250
      %v259 = vadd.f32 %v220, %v250
      %v260 = vadd.f32 %v221, %v250
      %v261 = vadd.f32 %v222, %v250
      %v262 = vadd.f32 %v223, %v250
      %v263 = vadd.f32 %v224, %v250
      %v264 = vadd.f32 %v225, %v250
      %v265 = vadd.f32 %v226, %v250
      %v266 = vadd.f32 %v227, %v250
      %v267 = vadd.f32 %v228, %v250
      %v268 = vadd.f32 %v229, %v250
      %v269 = vadd.f32 %v230, %v250
      %v270 = vadd.f32 %v231, %v250
      %v271 = vadd.f32 %v232, %v250
      %v272 = vadd.f32 %v233, %v250
      %v273 = vadd.f32 %v234, %v250
      %v274 = vadd.f32 %v235, %v250
      %v275 = vadd.f32 %v236, %v250
      %v276 = vadd.f32 %v237, %v250
      %v277 = vadd.f32 %v238, %v250
      %v278 = vadd.f32 %v239, %v250
      %v279 = vadd.f32 %v240, %v250
      %v280 = vadd.f32 %v241, %v250
      %v281 = vadd.f32 %v242, %v250
      %v282 = vadd.f32 %v243, %v250
      %v283 = vadd.f32 %v244, %v250
      %284 = vst [vmem:[%s172] sm:$0xff] %v252
      %285 = vst [vmem:[%s172 + $0x8] sm:$0xff] %v253
      %286 = vst [vmem:[%s172 + $0x10] sm:$0xff] %v254
      %287 = vst [vmem:[%s172 + $0x18] sm:$0xff] %v255
      %288 = vst [vmem:[%s172 + $0x20] sm:$0xff] %v256
      %289 = vst [vmem:[%s172 + $0x28] sm:$0xff] %v257
      %290 = vst [vmem:[%s172 + $0x30] sm:$0xff] %v258
      %291 = vst [vmem:[%s172 + $0x38] sm:$0xff] %v259
      %292 = vst [vmem:[%s172 + $0x40] sm:$0xff] %v260
      %293 = vst [vmem:[%s172 + $0x48] sm:$0xff] %v261
      %294 = vst [vmem:[%s172 + $0x50] sm:$0xff] %v262
      %295 = vst [vmem:[%s172 + $0x58] sm:$0xff] %v263
      %296 = vst [vmem:[%s172 + $0x60] sm:$0xff] %v264
      %297 = vst [vmem:[%s172 + $0x68] sm:$0xff] %v265
      %298 = vst [vmem:[%s172 + $0x70] sm:$0xff] %v266
      %299 = vst [vmem:[%s172 + $0x78] sm:$0xff] %v267
      %300 = vst [vmem:[%s172 + $0x80] sm:$0xff] %v268
      %301 = vst [vmem:[%s172 + $0x88] sm:$0xff] %v269
      %302 = vst [vmem:[%s172 + $0x90] sm:$0xff] %v270
      %303 = vst [vmem:[%s172 + $0x98] sm:$0xff] %v271
      %304 = vst [vmem:[%s172 + $0xa0] sm:$0xff] %v272
      %305 = vst [vmem:[%s172 + $0xa8] sm:$0xff] %v273
      %306 = vst [vmem:[%s172 + $0xb0] sm:$0xff] %v274
      %307 = vst [vmem:[%s172 + $0xb8] sm:$0xff] %v275
      %308 = vst [vmem:[%s172 + $0xc0] sm:$0xff] %v276
      %309 = vst [vmem:[%s172 + $0xc8] sm:$0xff] %v277
      %310 = vst [vmem:[%s172 + $0xd0] sm:$0xff] %v278
      %311 = vst [vmem:[%s172 + $0xd8] sm:$0xff] %v279
      %312 = vst [vmem:[%s172 + $0xe0] sm:$0xff] %v280
      %313 = vst [vmem:[%s172 + $0xe8] sm:$0xff] %v281
      %314 = vst [vmem:[%s172 + $0xf0] sm:$0xff] %v282
      %315 = vst [vmem:[%s172 + $0xf8] sm:$0xff] %v283
      %s316 = smul.u32 32, %s14
      %p317 = scmp.lt.s32.totalorder %s316, 63
      %s318 = scalar_select %p317, %s316, 63
      %s319 = smul.addr %s318, 8
      %s320 = scalar_lea.vmem %s3, %s319
      // Predicated region
      $region33: #{basic_conv2d.3} parent=31 // pred_check
        %p321 = pneg %p100
      $region34: #{basic_conv2d.3} parent=31 // pred_check_branch
        %323 = sbr.rel (%p321) target = $region36
      $region35: #{basic_conv2d.3} parent=31 // pred_region
        %s324 = smul.u32 32, %s14
      $region36: #{basic_conv2d.3} parent=31 // pred_fallthru
        _
    $region32: #{basic_conv2d.3} parent=5 // pred_fallthru
      _
    %p325 = scmp.le.s32.totalorder 2, %s9
    // Predicated region
    $region37: #{basic_conv2d.3} parent=5 // pred_check
      %p326 = pneg %p325
    $region38: #{basic_conv2d.3} parent=5 // pred_check_branch
      %328 = sbr.rel (%p326) target = $region40
    $region39: #{basic_conv2d.3} parent=5 // pred_region
      %s329 = ssub.s32 %s9, 2
      // Predicated region
      $region41: #{basic_conv2d.3} parent=39 // pred_check
        %p330 = pneg %p106
      $region42: #{basic_conv2d.3} parent=39 // pred_check_branch
        %332 = sbr.rel (%p330) target = $region44
      $region43: #{basic_conv2d.3} parent=39 // pred_region
        %s333 = smul.u32 32, %s15
        %p334 = scmp.lt.s32.totalorder %s333, 63
        %s335 = scalar_select %p334, %s333, 63
        %s336 = smul.addr %s335, 8
        %s337 = scalar_lea.vmem %s3, %s336
      $region44: #{basic_conv2d.3} parent=39 // pred_fallthru
        _
    $region40: #{basic_conv2d.3} parent=5 // pred_fallthru
      _
  $region6: #{basic_conv2d.3} parent=0 // loop_footer
    %s13 = sadd.s32 1, %s9
  $region7: #{basic_conv2d.3} parent=0 // loop_footer_branch
    %8 = sbr.rel target = $region3
  $region8: #{basic_conv2d.3} parent=0 // loop_exit
    _

// kernel: basic_conv2d.2
$region0: #{basic_conv2d.2}
  #allocation0 [shape = 'u32[]', space=smem, size = 0x4, offset = 0x4, fixed_abs, tag = 'smem constant byte address 0x4 - core index']
  #allocation1 [shape = 'u32[144,128]{1,0:T(1,128)}', space=vmem, size = 0x12000, scoped, tag = 'internal scratch']
  #allocation2 [shape = 'f32[256,128]{1,0:T(8,128)}', space=vmem, size = 0x20000, scoped, tag = 'scratch operand']
  %s0 = inlined_call_operand.vmem [shape: bf16[512,128], index: 0, kind: input, shape index: {}]
  %s1 = inlined_call_operand.vmem [shape: bf16[128,128], index: 1, kind: input, shape index: {}]
  %s2 = inlined_call_operand.vmem [shape: f32[512,128], index: 2, kind: output, shape index: {0}]
  %s3 = inlined_call_operand.vmem [shape: f32[2,2,128], index: 3, kind: output, shape index: {1}]
  %4 = xla_tuple %s2, %s3
  %s5 = sld [smem:[#allocation0]]
  $region57: #{basic_conv2d.2} parent=0
    _
  %s7 = ssub.s32 1, %s5
  %s8 = scalar_select 0, %s7, %s5
  loop: start=0, step=1, limit=4
  $region2: #{basic_conv2d.2} parent=0 // loop_pre_header
    _
  $region3: #{basic_conv2d.2} parent=0 // loop_header
    %s10 = sphi 0, %s14
    %p11 = scmp.ge.s32.totalorder %s10, 4
    %s17 = sphi 0, %s29
    %s18 = sphi 0, %s25
    %s19 = sphi 0, %s17
    %s20 = sphi 0, %s18
    %s21 = sphi 0, %s19
    %s22 = sphi 0, %s20
    %s34 = sphi 0, %s36
    %s37 = sphi 0, %s34
    %s38 = sphi 0, %s37
    %s54 = sphi 0, %s38
    %s60 = sphi 0, %s62
    %s63 = sphi 0, %s60
    %s64 = sphi 0, %s63
    %s80 = sphi 0, %s64
    %s86 = sphi 0, %s88
    %s89 = sphi 0, %s86
    %s90 = sphi 0, %s89
    %s106 = sphi 0, %s90
    %s112 = sphi 0, %s114
    %s115 = sphi 0, %s112
    %s116 = sphi 0, %s115
    %s132 = sphi 0, %s116
  $region4: #{basic_conv2d.2} parent=0 // loop_header_branch
    %13 = sbr.rel (%p11) target = $region8
  $region5: #{basic_conv2d.2} parent=0 // loop_body
    %s15 = ssub.s32 %s10, 1
    %s16 = ssub.s32 %s10, 2
    %s23 = sadd.s32 1, %s18
    %p24 = scmp.ge.s32.totalorder %s23, 1
    %s25 = scalar_select %p24, 0, %s23
    %s26 = sadd.s32 1, %s17
    %s27 = scalar_select %p24, %s26, %s17
    %p28 = scmp.ge.s32.totalorder %s27, 2
    %s29 = scalar_select %p28, 0, %s27
    %s30 = ssub.s32 %s17, %s29
    %s31 = ssub.s32 %s18, %s25
    %s32 = sor.u32 %s30, %s31
    %p33 = scmp.eq.s32.totalorder %s32, 0
    %s35 = sadd.s32 %s34, 1
    %s36 = scalar_select %p33, %s34, %s35
    %p39 = pneg %p33
    %p40 = scmp.eq.s32.totalorder %s10, 1
    %p41 = por %p39, %p40
    %p42 = scmp.ne.s32.totalorder %s34, %s37
    %p43 = scmp.eq.s32.totalorder %s10, 0
    %p44 = por %p42, %p43
    %p45 = scmp.ne.s32.totalorder %s34, %s37
    %p46 = scmp.eq.s32.totalorder %s15, 1
    %p47 = por %p45, %p46
    %p48 = scmp.ne.s32.totalorder %s37, %s38
    %p49 = scmp.eq.s32.totalorder %s15, 0
    %p50 = por %p48, %p49
    %p51 = scmp.ne.s32.totalorder %s37, %s38
    %p52 = scmp.eq.s32.totalorder %s16, 1
    %p53 = por %p51, %p52
    %p55 = scmp.ne.s32.totalorder %s38, %s54
    %p56 = scmp.eq.s32.totalorder %s16, 0
    %p57 = por %p55, %p56
    %s58 = ssub.s32 %s18, %s25
    %p59 = scmp.eq.s32.totalorder %s58, 0
    %s61 = sadd.s32 %s60, 1
    %s62 = scalar_select %p59, %s60, %s61
    %p65 = pneg %p59
    %p66 = scmp.eq.s32.totalorder %s10, 1
    %p67 = por %p65, %p66
    %p68 = scmp.ne.s32.totalorder %s60, %s63
    %p69 = scmp.eq.s32.totalorder %s10, 0
    %p70 = por %p68, %p69
    %p71 = scmp.ne.s32.totalorder %s60, %s63
    %p72 = scmp.eq.s32.totalorder %s15, 1
    %p73 = por %p71, %p72
    %p74 = scmp.ne.s32.totalorder %s63, %s64
    %p75 = scmp.eq.s32.totalorder %s15, 0
    %p76 = por %p74, %p75
    %p77 = scmp.ne.s32.totalorder %s63, %s64
    %p78 = scmp.eq.s32.totalorder %s16, 1
    %p79 = por %p77, %p78
    %p81 = scmp.ne.s32.totalorder %s64, %s80
    %p82 = scmp.eq.s32.totalorder %s16, 0
    %p83 = por %p81, %p82
    %s84 = ssub.s32 %s17, %s29
    %p85 = scmp.eq.s32.totalorder %s84, 0
    %s87 = sadd.s32 %s86, 1
    %s88 = scalar_select %p85, %s86, %s87
    %p91 = pneg %p85
    %p92 = scmp.eq.s32.totalorder %s10, 1
    %p93 = por %p91, %p92
    %p94 = scmp.ne.s32.totalorder %s86, %s89
    %p95 = scmp.eq.s32.totalorder %s10, 0
    %p96 = por %p94, %p95
    %p97 = scmp.ne.s32.totalorder %s86, %s89
    %p98 = scmp.eq.s32.totalorder %s15, 1
    %p99 = por %p97, %p98
    %p100 = scmp.ne.s32.totalorder %s89, %s90
    %p101 = scmp.eq.s32.totalorder %s15, 0
    %p102 = por %p100, %p101
    %p103 = scmp.ne.s32.totalorder %s89, %s90
    %p104 = scmp.eq.s32.totalorder %s16, 1
    %p105 = por %p103, %p104
    %p107 = scmp.ne.s32.totalorder %s90, %s106
    %p108 = scmp.eq.s32.totalorder %s16, 0
    %p109 = por %p107, %p108
    %s110 = ssub.s32 %s17, %s29
    %p111 = scmp.eq.s32.totalorder %s110, 0
    %s113 = sadd.s32 %s112, 1
    %s114 = scalar_select %p111, %s112, %s113
    %p117 = pneg %p111
    %p118 = scmp.eq.s32.totalorder %s10, 1
    %p119 = por %p117, %p118
    %p120 = scmp.ne.s32.totalorder %s112, %s115
    %p121 = scmp.eq.s32.totalorder %s10, 0
    %p122 = por %p120, %p121
    %p123 = scmp.ne.s32.totalorder %s112, %s115
    %p124 = scmp.eq.s32.totalorder %s15, 1
    %p125 = por %p123, %p124
    %p126 = scmp.ne.s32.totalorder %s115, %s116
    %p127 = scmp.eq.s32.totalorder %s15, 0
    %p128 = por %p126, %p127
    %p129 = scmp.ne.s32.totalorder %s115, %s116
    %p130 = scmp.eq.s32.totalorder %s16, 1
    %p131 = por %p129, %p130
    %p133 = scmp.ne.s32.totalorder %s116, %s132
    %p134 = scmp.eq.s32.totalorder %s16, 0
    %p135 = por %p133, %p134
    %p136 = scmp.le.s32.totalorder 1, %s10
    %p137 = scmp.lt.s32.totalorder %s10, 3
    %p138 = pnand %p136, %p137
    %p139 = pneg %p138
    // Predicated region
    $region9: #{basic_conv2d.2} parent=5 // pred_check
      _
    $region10: #{basic_conv2d.2} parent=5 // pred_check_branch
      %141 = sbr.rel (%p138) target = $region12
    $region11: #{basic_conv2d.2} parent=5 // pred_region
      %s142 = ssub.s32 %s10, 1
      // Predicated region
      $region13: #{basic_conv2d.2} parent=11 // pred_check
        %p143 = pneg %p76
      $region14: #{basic_conv2d.2} parent=11 // pred_check_branch
        %145 = sbr.rel (%p143) target = $region16
      $region15: #{basic_conv2d.2} parent=11 // pred_region
        %s146 = smul.u32 16, %s20
        %p147 = scmp.lt.s32.totalorder %s146, 15
        %s148 = scalar_select %p147, %s146, 15
        %s149 = smul.addr %s148, 4
        %s150 = scalar_lea.vmem %s1, %s149
        %s151 = smul.u32 16, %s20
      $region16: #{basic_conv2d.2} parent=11 // pred_fallthru
        _
    $region12: #{basic_conv2d.2} parent=5 // pred_fallthru
      _
    %p152 = scmp.lt.s32.totalorder %s10, 2
    // Predicated region
    $region17: #{basic_conv2d.2} parent=5 // pred_check
      %p153 = pneg %p152
    $region18: #{basic_conv2d.2} parent=5 // pred_check_branch
      %155 = sbr.rel (%p153) target = $region20
    $region19: #{basic_conv2d.2} parent=5 // pred_region
      // Predicated region
      $region21: #{basic_conv2d.2} parent=19 // pred_check
        %p156 = pneg %p44
      $region22: #{basic_conv2d.2} parent=19 // pred_check_branch
        %158 = sbr.rel (%p156) target = $region24
      $region23: #{basic_conv2d.2} parent=19 // pred_region
        %s159 = smul.u32 32, %s17
        %p160 = scmp.lt.s32.totalorder %s159, 63
        %s161 = scalar_select %p160, %s159, 63
        %p162 = scmp.lt.s32.totalorder %s18, 0
        %s163 = scalar_select %p162, %s18, 0
        %s164 = sadd.s32 %s163, %s161
        %s165 = smul.addr %s164, 4
        %s166 = scalar_lea.vmem %s0, %s165
        %s167 = smul.u32 32, %s17
      $region24: #{basic_conv2d.2} parent=19 // pred_fallthru
        _
    $region20: #{basic_conv2d.2} parent=5 // pred_fallthru
      _
    %p168 = scmp.le.s32.totalorder 1, %s10
    %p169 = scmp.lt.s32.totalorder %s10, 3
    %p170 = pnand %p168, %p169
    %p171 = pneg %p170
    // Predicated region
    $region25: #{basic_conv2d.2} parent=5 // pred_check
      _
    $region26: #{basic_conv2d.2} parent=5 // pred_check_branch
      %173 = sbr.rel (%p170) target = $region28
    $region27: #{basic_conv2d.2} parent=5 // pred_region
      %s174 = ssub.s32 %s10, 1
      %s175 = smul.u32 32, %s19
      %p176 = scmp.lt.s32.totalorder %s175, 63
      %s177 = scalar_select %p176, %s175, 63
      %p178 = scmp.lt.s32.totalorder %s20, 0
      %s179 = scalar_select %p178, %s20, 0
      %s180 = sadd.s32 %s179, %s177
      %s181 = smul.addr %s180, 4
      %s182 = scalar_lea.vmem %s0, %s181
      %p183 = pneg %p50
      %p184 = pneg %p47
      %s185 = smul.u32 16, %s20
      %p186 = scmp.lt.s32.totalorder %s185, 15
      %s187 = scalar_select %p186, %s185, 15
      %s188 = smul.addr %s187, 4
      %s189 = scalar_lea.vmem %s1, %s188
      %p190 = pneg %p76
      %p191 = pneg %p73
      %p192 = pneg %p102
      %p193 = pneg %p99
      %s194 = smul.u32 32, %s19
      %p195 = scmp.lt.s32.totalorder %s194, 63
      %s196 = scalar_select %p195, %s194, 63
      %s197 = smul.addr %s196, 8
      %s198 = scalar_lea.vmem %s2, %s197
      %p199 = pneg %p128
      %p200 = pneg %p125
      %p201 = scmp.lt.s32.totalorder %s19, 1
      %s202 = scalar_select %p201, %s19, 1
      %s203 = smul.addr %s202, 2
      %s204 = scalar_lea.vmem %s3, %s203
      %s205 = smul.u32 32, %s19
      %p206 = scmp.lt.s32.totalorder %s205, 63
      %s207 = scalar_select %p206, %s205, 63
      %p208 = scmp.lt.s32.totalorder %s20, 0
      %s209 = scalar_select %p208, %s20, 0
      %s210 = sadd.s32 %s209, %s207
      %s211 = smul.addr %s210, 4
      %s212 = scalar_lea.vmem %s0, %s211
      %s213 = smul.u32 32, %s19
      %s214 = smul.u32 16, %s20
      %p215 = scmp.lt.s32.totalorder %s214, 15
      %s216 = scalar_select %p215, %s214, 15
      %s217 = smul.addr %s216, 4
      %s218 = scalar_lea.vmem %s1, %s217
      %s219 = smul.u32 16, %s20
      %s220 = smul.u32 32, %s19
      %p221 = scmp.lt.s32.totalorder %s220, 63
      %s222 = scalar_select %p221, %s220, 63
      %s223 = smul.addr %s222, 8
      %s224 = scalar_lea.vmem %s2, %s223
      %s225 = smul.u32 32, %s19
      %p226 = scmp.lt.s32.totalorder %s19, 1
      %s227 = scalar_select %p226, %s19, 1
      %s228 = smul.addr %s227, 2
      %s229 = scalar_lea.vmem %s3, %s228
      %p231 = scmp.eq.s32.totalorder %s20, 0
      // Predicated region
      $region29: #{basic_conv2d.2} parent=27 // pred_check
        %p232 = pneg %p231
      $region30: #{basic_conv2d.2} parent=27 // pred_check_branch
        %234 = sbr.rel (%p232) target = $region32
      $region31: #{basic_conv2d.2} parent=27 // pred_region
        %235 = vst [vmem:[#allocation2] sm:$0xff] 0.0
        %236 = vst [vmem:[#allocation2 + $0x8] sm:$0xff] 0.0
        %237 = vst [vmem:[#allocation2 + $0x10] sm:$0xff] 0.0
        %238 = vst [vmem:[#allocation2 + $0x18] sm:$0xff] 0.0
        %239 = vst [vmem:[#allocation2 + $0x20] sm:$0xff] 0.0
        %240 = vst [vmem:[#allocation2 + $0x28] sm:$0xff] 0.0
        %241 = vst [vmem:[#allocation2 + $0x30] sm:$0xff] 0.0
        %242 = vst [vmem:[#allocation2 + $0x38] sm:$0xff] 0.0
        %243 = vst [vmem:[#allocation2 + $0x40] sm:$0xff] 0.0
        %244 = vst [vmem:[#allocation2 + $0x48] sm:$0xff] 0.0
        %245 = vst [vmem:[#allocation2 + $0x50] sm:$0xff] 0.0
        %246 = vst [vmem:[#allocation2 + $0x58] sm:$0xff] 0.0
        %247 = vst [vmem:[#allocation2 + $0x60] sm:$0xff] 0.0
        %248 = vst [vmem:[#allocation2 + $0x68] sm:$0xff] 0.0
        %249 = vst [vmem:[#allocation2 + $0x70] sm:$0xff] 0.0
        %250 = vst [vmem:[#allocation2 + $0x78] sm:$0xff] 0.0
        %251 = vst [vmem:[#allocation2 + $0x80] sm:$0xff] 0.0
        %252 = vst [vmem:[#allocation2 + $0x88] sm:$0xff] 0.0
        %253 = vst [vmem:[#allocation2 + $0x90] sm:$0xff] 0.0
        %254 = vst [vmem:[#allocation2 + $0x98] sm:$0xff] 0.0
        %255 = vst [vmem:[#allocation2 + $0xa0] sm:$0xff] 0.0
        %256 = vst [vmem:[#allocation2 + $0xa8] sm:$0xff] 0.0
        %257 = vst [vmem:[#allocation2 + $0xb0] sm:$0xff] 0.0
        %258 = vst [vmem:[#allocation2 + $0xb8] sm:$0xff] 0.0
        %259 = vst [vmem:[#allocation2 + $0xc0] sm:$0xff] 0.0
        %260 = vst [vmem:[#allocation2 + $0xc8] sm:$0xff] 0.0
        %261 = vst [vmem:[#allocation2 + $0xd0] sm:$0xff] 0.0
        %262 = vst [vmem:[#allocation2 + $0xd8] sm:$0xff] 0.0
        %263 = vst [vmem:[#allocation2 + $0xe0] sm:$0xff] 0.0
        %264 = vst [vmem:[#allocation2 + $0xe8] sm:$0xff] 0.0
        %265 = vst [vmem:[#allocation2 + $0xf0] sm:$0xff] 0.0
        %266 = vst [vmem:[#allocation2 + $0xf8] sm:$0xff] 0.0
      $region32: #{basic_conv2d.2} parent=27 // pred_fallthru
        _
      %v267 = vld [vmem:[#allocation2] sm:$0xff]
      %v268 = vld [vmem:[#allocation2 + $0x8] sm:$0xff]
      %v269 = vld [vmem:[#allocation2 + $0x10] sm:$0xff]
      %v270 = vld [vmem:[#allocation2 + $0x18] sm:$0xff]
      %v271 = vld [vmem:[#allocation2 + $0x20] sm:$0xff]
      %v272 = vld [vmem:[#allocation2 + $0x28] sm:$0xff]
      %v273 = vld [vmem:[#allocation2 + $0x30] sm:$0xff]
      %v274 = vld [vmem:[#allocation2 + $0x38] sm:$0xff]
      %v275 = vld [vmem:[#allocation2 + $0x40] sm:$0xff]
      %v276 = vld [vmem:[#allocation2 + $0x48] sm:$0xff]
      %v277 = vld [vmem:[#allocation2 + $0x50] sm:$0xff]
      %v278 = vld [vmem:[#allocation2 + $0x58] sm:$0xff]
      %v279 = vld [vmem:[#allocation2 + $0x60] sm:$0xff]
      %v280 = vld [vmem:[#allocation2 + $0x68] sm:$0xff]
      %v281 = vld [vmem:[#allocation2 + $0x70] sm:$0xff]
      %v282 = vld [vmem:[#allocation2 + $0x78] sm:$0xff]
      %v283 = vld [vmem:[#allocation2 + $0x80] sm:$0xff]
      %v284 = vld [vmem:[#allocation2 + $0x88] sm:$0xff]
      %v285 = vld [vmem:[#allocation2 + $0x90] sm:$0xff]
      %v286 = vld [vmem:[#allocation2 + $0x98] sm:$0xff]
      %v287 = vld [vmem:[#allocation2 + $0xa0] sm:$0xff]
      %v288 = vld [vmem:[#allocation2 + $0xa8] sm:$0xff]
      %v289 = vld [vmem:[#allocation2 + $0xb0] sm:$0xff]
      %v290 = vld [vmem:[#allocation2 + $0xb8] sm:$0xff]
      %v291 = vld [vmem:[#allocation2 + $0xc0] sm:$0xff]
      %v292 = vld [vmem:[#allocation2 + $0xc8] sm:$0xff]
      %v293 = vld [vmem:[#allocation2 + $0xd0] sm:$0xff]
      %v294 = vld [vmem:[#allocation2 + $0xd8] sm:$0xff]
      %v295 = vld [vmem:[#allocation2 + $0xe0] sm:$0xff]
      %v296 = vld [vmem:[#allocation2 + $0xe8] sm:$0xff]
      %v297 = vld [vmem:[#allocation2 + $0xf0] sm:$0xff]
      %v298 = vld [vmem:[#allocation2 + $0xf8] sm:$0xff]
      %v299 = vld [vmem:[%s212] sm:$0xf]
      %v300 = vld [vmem:[%s212 + $0x4] sm:$0xf]
      %v301 = vld [vmem:[%s212 + $0x8] sm:$0xf]
      %v302 = vld [vmem:[%s212 + $0xc] sm:$0xf]
      %v303 = vld [vmem:[%s212 + $0x10] sm:$0xf]
      %v304 = vld [vmem:[%s212 + $0x14] sm:$0xf]
      %v305 = vld [vmem:[%s212 + $0x18] sm:$0xf]
      %v306 = vld [vmem:[%s212 + $0x1c] sm:$0xf]
      %v307 = vld [vmem:[%s212 + $0x20] sm:$0xf]
      %v308 = vld [vmem:[%s212 + $0x24] sm:$0xf]
      %v309 = vld [vmem:[%s212 + $0x28] sm:$0xf]
      %v310 = vld [vmem:[%s212 + $0x2c] sm:$0xf]
      %v311 = vld [vmem:[%s212 + $0x30] sm:$0xf]
      %v312 = vld [vmem:[%s212 + $0x34] sm:$0xf]
      %v313 = vld [vmem:[%s212 + $0x38] sm:$0xf]
      %v314 = vld [vmem:[%s212 + $0x3c] sm:$0xf]
      %v315 = vld [vmem:[%s212 + $0x40] sm:$0xf]
      %v316 = vld [vmem:[%s212 + $0x44] sm:$0xf]
      %v317 = vld [vmem:[%s212 + $0x48] sm:$0xf]
      %v318 = vld [vmem:[%s212 + $0x4c] sm:$0xf]
      %v319 = vld [vmem:[%s212 + $0x50] sm:$0xf]
      %v320 = vld [vmem:[%s212 + $0x54] sm:$0xf]
      %v321 = vld [vmem:[%s212 + $0x58] sm:$0xf]
      %v322 = vld [vmem:[%s212 + $0x5c] sm:$0xf]
      %v323 = vld [vmem:[%s212 + $0x60] sm:$0xf]
      %v324 = vld [vmem:[%s212 + $0x64] sm:$0xf]
      %v325 = vld [vmem:[%s212 + $0x68] sm:$0xf]
      %v326 = vld [vmem:[%s212 + $0x6c] sm:$0xf]
      %v327 = vld [vmem:[%s212 + $0x70] sm:$0xf]
      %v328 = vld [vmem:[%s212 + $0x74] sm:$0xf]
      %v329 = vld [vmem:[%s212 + $0x78] sm:$0xf]
      %v330 = vld [vmem:[%s212 + $0x7c] sm:$0xf]
      %v331 = vld [vmem:[%s218] sm:$0xf]
      %v332 = vld [vmem:[%s218 + $0x4] sm:$0xf]
      %v333 = vld [vmem:[%s218 + $0x8] sm:$0xf]
      %v334 = vld [vmem:[%s218 + $0xc] sm:$0xf]
      %v335 = vld [vmem:[%s218 + $0x10] sm:$0xf]
      %v336 = vld [vmem:[%s218 + $0x14] sm:$0xf]
      %v337 = vld [vmem:[%s218 + $0x18] sm:$0xf]
      %v338 = vld [vmem:[%s218 + $0x1c] sm:$0xf]
      %v339 = vld [vmem:[%s218 + $0x20] sm:$0xf]
      %v340 = vld [vmem:[%s218 + $0x24] sm:$0xf]
      %v341 = vld [vmem:[%s218 + $0x28] sm:$0xf]
      %v342 = vld [vmem:[%s218 + $0x2c] sm:$0xf]
      %v343 = vld [vmem:[%s218 + $0x30] sm:$0xf]
      %v344 = vld [vmem:[%s218 + $0x34] sm:$0xf]
      %v345 = vld [vmem:[%s218 + $0x38] sm:$0xf]
      %v346 = vld [vmem:[%s218 + $0x3c] sm:$0xf]
      %v379 = vunpack.c.l.b16 %v299
      %v380 = vunpack.c.l.b16 %v300
      %v381 = vunpack.c.l.b16 %v301
      %v382 = vunpack.c.l.b16 %v302
      %v383 = vunpack.c.l.b16 %v303
      %v384 = vunpack.c.l.b16 %v304
      %v385 = vunpack.c.l.b16 %v305
      %v386 = vunpack.c.l.b16 %v306
      %v387 = vunpack.c.l.b16 %v307
      %v388 = vunpack.c.l.b16 %v308
      %v389 = vunpack.c.l.b16 %v309
      %v390 = vunpack.c.l.b16 %v310
      %v391 = vunpack.c.l.b16 %v311
      %v392 = vunpack.c.l.b16 %v312
      %v393 = vunpack.c.l.b16 %v313
      %v394 = vunpack.c.l.b16 %v314
      %v395 = vunpack.c.l.b16 %v315
      %v396 = vunpack.c.l.b16 %v316
      %v397 = vunpack.c.l.b16 %v317
      %v398 = vunpack.c.l.b16 %v318
      %v399 = vunpack.c.l.b16 %v319
      %v400 = vunpack.c.l.b16 %v320
      %v401 = vunpack.c.l.b16 %v321
      %v402 = vunpack.c.l.b16 %v322
      %v403 = vunpack.c.l.b16 %v323
      %v404 = vunpack.c.l.b16 %v324
      %v405 = vunpack.c.l.b16 %v325
      %v406 = vunpack.c.l.b16 %v326
      %v407 = vunpack.c.l.b16 %v327
      %v408 = vunpack.c.l.b16 %v328
      %v409 = vunpack.c.l.b16 %v329
      %v410 = vunpack.c.l.b16 %v330
      %v411 = vpack.c.b16 %v380, %v379
      %v412 = vpack.c.b16 %v382, %v381
      %v413 = vpack.c.b16 %v384, %v383
      %v414 = vpack.c.b16 %v386, %v385
      %v415 = vpack.c.b16 %v388, %v387
      %v416 = vpack.c.b16 %v390, %v389
      %v417 = vpack.c.b16 %v392, %v391
      %v418 = vpack.c.b16 %v394, %v393
      %v419 = vpack.c.b16 %v396, %v395
      %v420 = vpack.c.b16 %v398, %v397
      %v421 = vpack.c.b16 %v400, %v399
      %v422 = vpack.c.b16 %v402, %v401
      %v423 = vpack.c.b16 %v404, %v403
      %v424 = vpack.c.b16 %v406, %v405
      %v425 = vpack.c.b16 %v408, %v407
      %v426 = vpack.c.b16 %v410, %v409
      %v459 = vunpack.c.l.b16 %v331
      %v460 = vunpack.c.l.b16 %v332
      %v461 = vunpack.c.l.b16 %v333
      %v462 = vunpack.c.l.b16 %v334
      %v463 = vunpack.c.l.b16 %v335
      %v464 = vunpack.c.l.b16 %v336
      %v465 = vunpack.c.l.b16 %v337
      %v466 = vunpack.c.l.b16 %v338
      %v467 = vunpack.c.l.b16 %v339
      %v468 = vunpack.c.l.b16 %v340
      %v469 = vunpack.c.l.b16 %v341
      %v470 = vunpack.c.l.b16 %v342
      %v471 = vunpack.c.l.b16 %v343
      %v472 = vunpack.c.l.b16 %v344
      %v473 = vunpack.c.l.b16 %v345
      %v474 = vunpack.c.l.b16 %v346
      %v475 = vpack.c.b16 %v460, %v459
      %v476 = vpack.c.b16 %v462, %v461
      %v477 = vpack.c.b16 %v464, %v463
      %v478 = vpack.c.b16 %v466, %v465
      %v479 = vpack.c.b16 %v468, %v467
      %v480 = vpack.c.b16 %v470, %v469
      %v481 = vpack.c.b16 %v472, %v471
      %v482 = vpack.c.b16 %v474, %v473
      %491 = vmatprep.subr.bf16.mxu0 0
      %492 = vmatpush1.bf16.msra.mxu0 %v475
      %493 = vmatprep.subr.bf16.mxu0 0
      %494 = vmatpush1.bf16.msra.mxu0 %v476
      %495 = vmatprep.subr.bf16.mxu0 0
      %496 = vmatpush1.bf16.msra.mxu0 %v477
      %497 = vmatprep.subr.bf16.mxu0 0
      %498 = vmatpush1.bf16.msra.mxu0 %v478
      %499 = vmatprep.subr.bf16.mxu0 0
      %500 = vmatpush1.bf16.msra.mxu0 %v479
      %501 = vmatprep.subr.bf16.mxu0 0
      %502 = vmatpush1.bf16.msra.mxu0 %v480
      %503 = vmatprep.subr.bf16.mxu0 0
      %504 = vmatpush1.bf16.msra.mxu0 %v481
      %505 = vmatprep.subr.bf16.mxu0 0
      %506 = vmatpush1.bf16.msra.mxu0 %v482
      %507 = vmatprep.subr.bf16.mxu0 0
      %508 = vmatpush1.bf16.msra.mxu0 0
      %509 = vmatprep.subr.bf16.mxu0 0
      %510 = vmatpush1.bf16.msra.mxu0 0
      %511 = vmatprep.subr.bf16.mxu0 0
      %512 = vmatpush1.bf16.msra.mxu0 0
      %513 = vmatprep.subr.bf16.mxu0 0
      %514 = vmatpush1.bf16.msra.mxu0 0
      %515 = vmatprep.subr.bf16.mxu0 0
      %516 = vmatpush1.bf16.msra.mxu0 0
      %517 = vmatprep.subr.bf16.mxu0 0
      %518 = vmatpush1.bf16.msra.mxu0 0
      %519 = vmatprep.subr.bf16.mxu0 0
      %520 = vmatpush1.bf16.msra.mxu0 0
      %521 = vmatprep.subr.bf16.mxu0 0
      %522 = vmatpush1.bf16.msra.mxu0 0
      %523 = vmatprep.mubr.bf16.mxu0 0
      %524 = vmatmul.mubr.bf16.gmra.mrb[0].mxu0 %v411
      %v525 = vpop.f32.mrb[0].mxu0
      %v526 = vadd.f32 0.0, %v525
      %v527 = vpop.f32.mrb[0].mxu0
      %v528 = vpop.f32.mrb[0].mxu0
      %v529 = vadd.f32 0.0, %v528
      %v530 = vpop.f32.mrb[0].mxu0
      %531 = vmatprep.mubr.bf16.mxu0 0
      %532 = vmatmul.mubr.bf16.gmra.mrb[0].mxu0 %v412
      %v533 = vpop.f32.mrb[0].mxu0
      %v534 = vadd.f32 0.0, %v533
      %v535 = vpop.f32.mrb[0].mxu0
      %v536 = vpop.f32.mrb[0].mxu0
      %v537 = vadd.f32 0.0, %v536
      %v538 = vpop.f32.mrb[0].mxu0
      %539 = vmatprep.mubr.bf16.mxu0 0
      %540 = vmatmul.mubr.bf16.gmra.mrb[0].mxu0 %v413
      %v541 = vpop.f32.mrb[0].mxu0
      %v542 = vadd.f32 0.0, %v541
      %v543 = vpop.f32.mrb[0].mxu0
      %v544 = vpop.f32.mrb[0].mxu0
      %v545 = vadd.f32 0.0, %v544
      %v546 = vpop.f32.mrb[0].mxu0
      %547 = vmatprep.mubr.bf16.mxu0 0
      %548 = vmatmul.mubr.bf16.gmra.mrb[0].mxu0 %v414
      %v549 = vpop.f32.mrb[0].mxu0
      %v550 = vadd.f32 0.0, %v549
      %v551 = vpop.f32.mrb[0].mxu0
      %v552 = vpop.f32.mrb[0].mxu0
      %v553 = vadd.f32 0.0, %v552
      %v554 = vpop.f32.mrb[0].mxu0
      %555 = vmatprep.mubr.bf16.mxu0 0
      %556 = vmatmul.mubr.bf16.gmra.mrb[0].mxu0 %v415
      %v557 = vpop.f32.mrb[0].mxu0
      %v558 = vadd.f32 0.0, %v557
      %v559 = vpop.f32.mrb[0].mxu0
      %v560 = vpop.f32.mrb[0].mxu0
      %v561 = vadd.f32 0.0, %v560
      %v562 = vpop.f32.mrb[0].mxu0
      %563 = vmatprep.mubr.bf16.mxu0 0
      %564 = vmatmul.mubr.bf16.gmra.mrb[0].mxu0 %v416
      %v565 = vpop.f32.mrb[0].mxu0
      %v566 = vadd.f32 0.0, %v565
      %v567 = vpop.f32.mrb[0].mxu0
      %v568 = vpop.f32.mrb[0].mxu0
      %v569 = vadd.f32 0.0, %v568
      %v570 = vpop.f32.mrb[0].mxu0
      %571 = vmatprep.mubr.bf16.mxu0 0
      %572 = vmatmul.mubr.bf16.gmra.mrb[0].mxu0 %v417
      %v573 = vpop.f32.mrb[0].mxu0
      %v574 = vadd.f32 0.0, %v573
      %v575 = vpop.f32.mrb[0].mxu0
      %v576 = vpop.f32.mrb[0].mxu0
      %v577 = vadd.f32 0.0, %v576
      %v578 = vpop.f32.mrb[0].mxu0
      %579 = vmatprep.mubr.bf16.mxu0 0
      %580 = vmatmul.mubr.bf16.gmra.mrb[0].mxu0 %v418
      %v581 = vpop.f32.mrb[0].mxu0
      %v582 = vadd.f32 0.0, %v581
      %v583 = vpop.f32.mrb[0].mxu0
      %v584 = vpop.f32.mrb[0].mxu0
      %v585 = vadd.f32 0.0, %v584
      %v586 = vpop.f32.mrb[0].mxu0
      %587 = vmatprep.mubr.bf16.mxu0 0
      %588 = vmatmul.mubr.bf16.gmra.mrb[0].mxu0 %v419
      %v589 = vpop.f32.mrb[0].mxu0
      %v590 = vadd.f32 0.0, %v589
      %v591 = vpop.f32.mrb[0].mxu0
      %v592 = vpop.f32.mrb[0].mxu0
      %v593 = vadd.f32 0.0, %v592
      %v594 = vpop.f32.mrb[0].mxu0
      %595 = vmatprep.mubr.bf16.mxu0 0
      %596 = vmatmul.mubr.bf16.gmra.mrb[0].mxu0 %v420
      %v597 = vpop.f32.mrb[0].mxu0
      %v598 = vadd.f32 0.0, %v597
      %v599 = vpop.f32.mrb[0].mxu0
      %v600 = vpop.f32.mrb[0].mxu0
      %v601 = vadd.f32 0.0, %v600
      %v602 = vpop.f32.mrb[0].mxu0
      %603 = vmatprep.mubr.bf16.mxu0 0
      %604 = vmatmul.mubr.bf16.gmra.mrb[0].mxu0 %v421
      %v605 = vpop.f32.mrb[0].mxu0
      %v606 = vadd.f32 0.0, %v605
      %v607 = vpop.f32.mrb[0].mxu0
      %v608 = vpop.f32.mrb[0].mxu0
      %v609 = vadd.f32 0.0, %v608
      %v610 = vpop.f32.mrb[0].mxu0
      %611 = vmatprep.mubr.bf16.mxu0 0
      %612 = vmatmul.mubr.bf16.gmra.mrb[0].mxu0 %v422
      %v613 = vpop.f32.mrb[0].mxu0
      %v614 = vadd.f32 0.0, %v613
      %v615 = vpop.f32.mrb[0].mxu0
      %v616 = vpop.f32.mrb[0].mxu0
      %v617 = vadd.f32 0.0, %v616
      %v618 = vpop.f32.mrb[0].mxu0
      %619 = vmatprep.mubr.bf16.mxu0 0
      %620 = vmatmul.mubr.bf16.gmra.mrb[0].mxu0 %v423
      %v621 = vpop.f32.mrb[0].mxu0
      %v622 = vadd.f32 0.0, %v621
      %v623 = vpop.f32.mrb[0].mxu0
      %v624 = vpop.f32.mrb[0].mxu0
      %v625 = vadd.f32 0.0, %v624
      %v626 = vpop.f32.mrb[0].mxu0
      %627 = vmatprep.mubr.bf16.mxu0 0
      %628 = vmatmul.mubr.bf16.gmra.mrb[0].mxu0 %v424
      %v629 = vpop.f32.mrb[0].mxu0
      %v630 = vadd.f32 0.0, %v629
      %v631 = vpop.f32.mrb[0].mxu0
      %v632 = vpop.f32.mrb[0].mxu0
      %v633 = vadd.f32 0.0, %v632
      %v634 = vpop.f32.mrb[0].mxu0
      %635 = vmatprep.mubr.bf16.mxu0 0
      %636 = vmatmul.mubr.bf16.gmra.mrb[0].mxu0 %v425
      %v637 = vpop.f32.mrb[0].mxu0
      %v638 = vadd.f32 0.0, %v637
      %v639 = vpop.f32.mrb[0].mxu0
      %v640 = vpop.f32.mrb[0].mxu0
      %v641 = vadd.f32 0.0, %v640
      %v642 = vpop.f32.mrb[0].mxu0
      %643 = vmatprep.mubr.bf16.mxu0 0
      %644 = vmatmul.mubr.bf16.gmra.mrb[0].mxu0 %v426
      %v645 = vpop.f32.mrb[0].mxu0
      %v646 = vadd.f32 0.0, %v645
      %v647 = vpop.f32.mrb[0].mxu0
      %v648 = vpop.f32.mrb[0].mxu0
      %v649 = vadd.f32 0.0, %v648
      %v650 = vpop.f32.mrb[0].mxu0
      %651 = vdwg.mxu0
      %v652 = vadd.f32 %v267, %v526
      %v653 = vadd.f32 %v268, %v529
      %v654 = vadd.f32 %v269, %v534
      %v655 = vadd.f32 %v270, %v537
      %v656 = vadd.f32 %v271, %v542
      %v657 = vadd.f32 %v272, %v545
      %v658 = vadd.f32 %v273, %v550
      %v659 = vadd.f32 %v274, %v553
      %v660 = vadd.f32 %v275, %v558
      %v661 = vadd.f32 %v276, %v561
      %v662 = vadd.f32 %v277, %v566
      %v663 = vadd.f32 %v278, %v569
      %v664 = vadd.f32 %v279, %v574
      %v665 = vadd.f32 %v280, %v577
      %v666 = vadd.f32 %v281, %v582
      %v667 = vadd.f32 %v282, %v585
      %v668 = vadd.f32 %v283, %v590
      %v669 = vadd.f32 %v284, %v593
      %v670 = vadd.f32 %v285, %v598
      %v671 = vadd.f32 %v286, %v601
      %v672 = vadd.f32 %v287, %v606
      %v673 = vadd.f32 %v288, %v609
      %v674 = vadd.f32 %v289, %v614
      %v675 = vadd.f32 %v290, %v617
      %v676 = vadd.f32 %v291, %v622
      %v677 = vadd.f32 %v292, %v625
      %v678 = vadd.f32 %v293, %v630
      %v679 = vadd.f32 %v294, %v633
      %v680 = vadd.f32 %v295, %v638
      %v681 = vadd.f32 %v296, %v641
      %v682 = vadd.f32 %v297, %v646
      %v683 = vadd.f32 %v298, %v649
      %684 = vst [vmem:[#allocation2] sm:$0xff] %v652
      %685 = vst [vmem:[#allocation2 + $0x8] sm:$0xff] %v653
      %686 = vst [vmem:[#allocation2 + $0x10] sm:$0xff] %v654
      %687 = vst [vmem:[#allocation2 + $0x18] sm:$0xff] %v655
      %688 = vst [vmem:[#allocation2 + $0x20] sm:$0xff] %v656
      %689 = vst [vmem:[#allocation2 + $0x28] sm:$0xff] %v657
      %690 = vst [vmem:[#allocation2 + $0x30] sm:$0xff] %v658
      %691 = vst [vmem:[#allocation2 + $0x38] sm:$0xff] %v659
      %692 = vst [vmem:[#allocation2 + $0x40] sm:$0xff] %v660
      %693 = vst [vmem:[#allocation2 + $0x48] sm:$0xff] %v661
      %694 = vst [vmem:[#allocation2 + $0x50] sm:$0xff] %v662
      %695 = vst [vmem:[#allocation2 + $0x58] sm:$0xff] %v663
      %696 = vst [vmem:[#allocation2 + $0x60] sm:$0xff] %v664
      %697 = vst [vmem:[#allocation2 + $0x68] sm:$0xff] %v665
      %698 = vst [vmem:[#allocation2 + $0x70] sm:$0xff] %v666
      %699 = vst [vmem:[#allocation2 + $0x78] sm:$0xff] %v667
      %700 = vst [vmem:[#allocation2 + $0x80] sm:$0xff] %v668
      %701 = vst [vmem:[#allocation2 + $0x88] sm:$0xff] %v669
      %702 = vst [vmem:[#allocation2 + $0x90] sm:$0xff] %v670
      %703 = vst [vmem:[#allocation2 + $0x98] sm:$0xff] %v671
      %704 = vst [vmem:[#allocation2 + $0xa0] sm:$0xff] %v672
      %705 = vst [vmem:[#allocation2 + $0xa8] sm:$0xff] %v673
      %706 = vst [vmem:[#allocation2 + $0xb0] sm:$0xff] %v674
      %707 = vst [vmem:[#allocation2 + $0xb8] sm:$0xff] %v675
      %708 = vst [vmem:[#allocation2 + $0xc0] sm:$0xff] %v676
      %709 = vst [vmem:[#allocation2 + $0xc8] sm:$0xff] %v677
      %710 = vst [vmem:[#allocation2 + $0xd0] sm:$0xff] %v678
      %711 = vst [vmem:[#allocation2 + $0xd8] sm:$0xff] %v679
      %712 = vst [vmem:[#allocation2 + $0xe0] sm:$0xff] %v680
      %713 = vst [vmem:[#allocation2 + $0xe8] sm:$0xff] %v681
      %714 = vst [vmem:[#allocation2 + $0xf0] sm:$0xff] %v682
      %715 = vst [vmem:[#allocation2 + $0xf8] sm:$0xff] %v683
      // Predicated region
      $region33: #{basic_conv2d.2} parent=27 // pred_check
        %p716 = pneg %p231
      $region34: #{basic_conv2d.2} parent=27 // pred_check_branch
        %718 = sbr.rel (%p716) target = $region36
      $region35: #{basic_conv2d.2} parent=27 // pred_region
        %v719 = vld [vmem:[#allocation2] sm:$0xff]
        %v720 = vld [vmem:[#allocation2 + $0x8] sm:$0xff]
        %v721 = vld [vmem:[#allocation2 + $0x10] sm:$0xff]
        %v722 = vld [vmem:[#allocation2 + $0x18] sm:$0xff]
        %v723 = vld [vmem:[#allocation2 + $0x20] sm:$0xff]
        %v724 = vld [vmem:[#allocation2 + $0x28] sm:$0xff]
        %v725 = vld [vmem:[#allocation2 + $0x30] sm:$0xff]
        %v726 = vld [vmem:[#allocation2 + $0x38] sm:$0xff]
        %v727 = vld [vmem:[#allocation2 + $0x40] sm:$0xff]
        %v728 = vld [vmem:[#allocation2 + $0x48] sm:$0xff]
        %v729 = vld [vmem:[#allocation2 + $0x50] sm:$0xff]
        %v730 = vld [vmem:[#allocation2 + $0x58] sm:$0xff]
        %v731 = vld [vmem:[#allocation2 + $0x60] sm:$0xff]
        %v732 = vld [vmem:[#allocation2 + $0x68] sm:$0xff]
        %v733 = vld [vmem:[#allocation2 + $0x70] sm:$0xff]
        %v734 = vld [vmem:[#allocation2 + $0x78] sm:$0xff]
        %v735 = vld [vmem:[#allocation2 + $0x80] sm:$0xff]
        %v736 = vld [vmem:[#allocation2 + $0x88] sm:$0xff]
        %v737 = vld [vmem:[#allocation2 + $0x90] sm:$0xff]
        %v738 = vld [vmem:[#allocation2 + $0x98] sm:$0xff]
        %v739 = vld [vmem:[#allocation2 + $0xa0] sm:$0xff]
        %v740 = vld [vmem:[#allocation2 + $0xa8] sm:$0xff]
        %v741 = vld [vmem:[#allocation2 + $0xb0] sm:$0xff]
        %v742 = vld [vmem:[#allocation2 + $0xb8] sm:$0xff]
        %v743 = vld [vmem:[#allocation2 + $0xc0] sm:$0xff]
        %v744 = vld [vmem:[#allocation2 + $0xc8] sm:$0xff]
        %v745 = vld [vmem:[#allocation2 + $0xd0] sm:$0xff]
        %v746 = vld [vmem:[#allocation2 + $0xd8] sm:$0xff]
        %v747 = vld [vmem:[#allocation2 + $0xe0] sm:$0xff]
        %v748 = vld [vmem:[#allocation2 + $0xe8] sm:$0xff]
        %v749 = vld [vmem:[#allocation2 + $0xf0] sm:$0xff]
        %v750 = vld [vmem:[#allocation2 + $0xf8] sm:$0xff]
        %v751 = vmax.f32 %v719, 0.0
        %v752 = vmax.f32 %v720, 0.0
        %v753 = vmax.f32 %v721, 0.0
        %v754 = vmax.f32 %v722, 0.0
        %v755 = vmax.f32 %v723, 0.0
        %v756 = vmax.f32 %v724, 0.0
        %v757 = vmax.f32 %v725, 0.0
        %v758 = vmax.f32 %v726, 0.0
        %v759 = vmax.f32 %v727, 0.0
        %v760 = vmax.f32 %v728, 0.0
        %v761 = vmax.f32 %v729, 0.0
        %v762 = vmax.f32 %v730, 0.0
        %v763 = vmax.f32 %v731, 0.0
        %v764 = vmax.f32 %v732, 0.0
        %v765 = vmax.f32 %v733, 0.0
        %v766 = vmax.f32 %v734, 0.0
        %v767 = vmax.f32 %v735, 0.0
        %v768 = vmax.f32 %v736, 0.0
        %v769 = vmax.f32 %v737, 0.0
        %v770 = vmax.f32 %v738, 0.0
        %v771 = vmax.f32 %v739, 0.0
        %v772 = vmax.f32 %v740, 0.0
        %v773 = vmax.f32 %v741, 0.0
        %v774 = vmax.f32 %v742, 0.0
        %v775 = vmax.f32 %v743, 0.0
        %v776 = vmax.f32 %v744, 0.0
        %v777 = vmax.f32 %v745, 0.0
        %v778 = vmax.f32 %v746, 0.0
        %v779 = vmax.f32 %v747, 0.0
        %v780 = vmax.f32 %v748, 0.0
        %v781 = vmax.f32 %v749, 0.0
        %v782 = vmax.f32 %v750, 0.0
        %783 = vst [vmem:[%s224] sm:$0xff] %v751
        %784 = vst [vmem:[%s224 + $0x8] sm:$0xff] %v752
        %785 = vst [vmem:[%s224 + $0x10] sm:$0xff] %v753
        %786 = vst [vmem:[%s224 + $0x18] sm:$0xff] %v754
        %787 = vst [vmem:[%s224 + $0x20] sm:$0xff] %v755
        %788 = vst [vmem:[%s224 + $0x28] sm:$0xff] %v756
        %789 = vst [vmem:[%s224 + $0x30] sm:$0xff] %v757
        %790 = vst [vmem:[%s224 + $0x38] sm:$0xff] %v758
        %791 = vst [vmem:[%s224 + $0x40] sm:$0xff] %v759
        %792 = vst [vmem:[%s224 + $0x48] sm:$0xff] %v760
        %793 = vst [vmem:[%s224 + $0x50] sm:$0xff] %v761
        %794 = vst [vmem:[%s224 + $0x58] sm:$0xff] %v762
        %795 = vst [vmem:[%s224 + $0x60] sm:$0xff] %v763
        %796 = vst [vmem:[%s224 + $0x68] sm:$0xff] %v764
        %797 = vst [vmem:[%s224 + $0x70] sm:$0xff] %v765
        %798 = vst [vmem:[%s224 + $0x78] sm:$0xff] %v766
        %799 = vst [vmem:[%s224 + $0x80] sm:$0xff] %v767
        %800 = vst [vmem:[%s224 + $0x88] sm:$0xff] %v768
        %801 = vst [vmem:[%s224 + $0x90] sm:$0xff] %v769
        %802 = vst [vmem:[%s224 + $0x98] sm:$0xff] %v770
        %803 = vst [vmem:[%s224 + $0xa0] sm:$0xff] %v771
        %804 = vst [vmem:[%s224 + $0xa8] sm:$0xff] %v772
        %805 = vst [vmem:[%s224 + $0xb0] sm:$0xff] %v773
        %806 = vst [vmem:[%s224 + $0xb8] sm:$0xff] %v774
        %807 = vst [vmem:[%s224 + $0xc0] sm:$0xff] %v775
        %808 = vst [vmem:[%s224 + $0xc8] sm:$0xff] %v776
        %809 = vst [vmem:[%s224 + $0xd0] sm:$0xff] %v777
        %810 = vst [vmem:[%s224 + $0xd8] sm:$0xff] %v778
        %811 = vst [vmem:[%s224 + $0xe0] sm:$0xff] %v779
        %812 = vst [vmem:[%s224 + $0xe8] sm:$0xff] %v780
        %813 = vst [vmem:[%s224 + $0xf0] sm:$0xff] %v781
        %814 = vst [vmem:[%s224 + $0xf8] sm:$0xff] %v782
        %v815 = vadd.f32 %v751, %v752
        %v816 = vadd.f32 %v815, %v753
        %v817 = vadd.f32 %v816, %v754
        %v818 = vadd.f32 %v817, %v755
        %v819 = vadd.f32 %v818, %v756
        %v820 = vadd.f32 %v819, %v757
        %v821 = vadd.f32 %v820, %v758
        %v822 = vadd.f32 %v821, %v759
        %v823 = vadd.f32 %v822, %v760
        %v824 = vadd.f32 %v823, %v761
        %v825 = vadd.f32 %v824, %v762
        %v826 = vadd.f32 %v825, %v763
        %v827 = vadd.f32 %v826, %v764
        %v828 = vadd.f32 %v827, %v765
        %v829 = vadd.f32 %v828, %v766
        %v830 = vadd.f32 %v829, %v767
        %v831 = vadd.f32 %v830, %v768
        %v832 = vadd.f32 %v831, %v769
        %v833 = vadd.f32 %v832, %v770
        %v834 = vadd.f32 %v833, %v771
        %v835 = vadd.f32 %v834, %v772
        %v836 = vadd.f32 %v835, %v773
        %v837 = vadd.f32 %v836, %v774
        %v838 = vadd.f32 %v837, %v775
        %v839 = vadd.f32 %v838, %v776
        %v840 = vadd.f32 %v839, %v777
        %v841 = vadd.f32 %v840, %v778
        %v842 = vadd.f32 %v841, %v779
        %v843 = vadd.f32 %v842, %v780
        %v844 = vadd.f32 %v843, %v781
        %v845 = vadd.f32 %v844, %v782
        %v846 = vrot.slane %v845, 4
        %v847 = vadd.f32 %v845, %v846
        %v848 = vrot.slane %v847, 2
        %v849 = vadd.f32 %v847, %v848
        %v850 = vrot.slane %v849, 1
        %v851 = vadd.f32 %v849, %v850
        %852 = vst [vmem:[%s229] sm:$0x1] %v851
        %v853 = vmul.f32 %v751, %v751
        %v854 = vmul.f32 %v752, %v752
        %v855 = vmul.f32 %v753, %v753
        %v856 = vmul.f32 %v754, %v754
        %v857 = vmul.f32 %v755, %v755
        %v858 = vmul.f32 %v756, %v756
        %v859 = vmul.f32 %v757, %v757
        %v860 = vmul.f32 %v758, %v758
        %v861 = vmul.f32 %v759, %v759
        %v862 = vmul.f32 %v760, %v760
        %v863 = vmul.f32 %v761, %v761
        %v864 = vmul.f32 %v762, %v762
        %v865 = vmul.f32 %v763, %v763
        %v866 = vmul.f32 %v764, %v764
        %v867 = vmul.f32 %v765, %v765
        %v868 = vmul.f32 %v766, %v766
        %v869 = vmul.f32 %v767, %v767
        %v870 = vmul.f32 %v768, %v768
        %v871 = vmul.f32 %v769, %v769
        %v872 = vmul.f32 %v770, %v770
        %v873 = vmul.f32 %v771, %v771
        %v874 = vmul.f32 %v772, %v772
        %v875 = vmul.f32 %v773, %v773
        %v876 = vmul.f32 %v774, %v774
        %v877 = vmul.f32 %v775, %v775
        %v878 = vmul.f32 %v776, %v776
        %v879 = vmul.f32 %v777, %v777
        %v880 = vmul.f32 %v778, %v778
        %v881 = vmul.f32 %v779, %v779
        %v882 = vmul.f32 %v780, %v780
        %v883 = vmul.f32 %v781, %v781
        %v884 = vmul.f32 %v782, %v782
        %v885 = vadd.f32 %v853, %v854
        %v886 = vadd.f32 %v885, %v855
        %v887 = vadd.f32 %v886, %v856
        %v888 = vadd.f32 %v887, %v857
        %v889 = vadd.f32 %v888, %v858
        %v890 = vadd.f32 %v889, %v859
        %v891 = vadd.f32 %v890, %v860
        %v892 = vadd.f32 %v891, %v861
        %v893 = vadd.f32 %v892, %v862
        %v894 = vadd.f32 %v893, %v863
        %v895 = vadd.f32 %v894, %v864
        %v896 = vadd.f32 %v895, %v865
        %v897 = vadd.f32 %v896, %v866
        %v898 = vadd.f32 %v897, %v867
        %v899 = vadd.f32 %v898, %v868
        %v900 = vadd.f32 %v899, %v869
        %v901 = vadd.f32 %v900, %v870
        %v902 = vadd.f32 %v901, %v871
        %v903 = vadd.f32 %v902, %v872
        %v904 = vadd.f32 %v903, %v873
        %v905 = vadd.f32 %v904, %v874
        %v906 = vadd.f32 %v905, %v875
        %v907 = vadd.f32 %v906, %v876
        %v908 = vadd.f32 %v907, %v877
        %v909 = vadd.f32 %v908, %v878
        %v910 = vadd.f32 %v909, %v879
        %v911 = vadd.f32 %v910, %v880
        %v912 = vadd.f32 %v911, %v881
        %v913 = vadd.f32 %v912, %v882
        %v914 = vadd.f32 %v913, %v883
        %v915 = vadd.f32 %v914, %v884
        %v916 = vrot.slane %v915, 4
        %v917 = vadd.f32 %v915, %v916
        %v918 = vrot.slane %v917, 2
        %v919 = vadd.f32 %v917, %v918
        %v920 = vrot.slane %v919, 1
        %v921 = vadd.f32 %v919, %v920
        %922 = vst [vmem:[%s229 + $0x1] sm:$0x1] %v921
      $region36: #{basic_conv2d.2} parent=27 // pred_fallthru
        _
      %s923 = smul.u32 32, %s19
      %p924 = scmp.lt.s32.totalorder %s923, 63
      %s925 = scalar_select %p924, %s923, 63
      %s926 = smul.addr %s925, 8
      %s927 = scalar_lea.vmem %s2, %s926
      %p928 = scmp.lt.s32.totalorder %s19, 1
      %s929 = scalar_select %p928, %s19, 1
      %s930 = smul.addr %s929, 2
      %s931 = scalar_lea.vmem %s3, %s930
      // Predicated region
      $region37: #{basic_conv2d.2} parent=27 // pred_check
        %p932 = pneg %p99
      $region38: #{basic_conv2d.2} parent=27 // pred_check_branch
        %934 = sbr.rel (%p932) target = $region40
      $region39: #{basic_conv2d.2} parent=27 // pred_region
        %s935 = smul.u32 32, %s19
      $region40: #{basic_conv2d.2} parent=27 // pred_fallthru
        _
      // Predicated region
      $region41: #{basic_conv2d.2} parent=27 // pred_check
        %p936 = pneg %p125
      $region42: #{basic_conv2d.2} parent=27 // pred_check_branch
        %938 = sbr.rel (%p936) target = $region44
      $region43: #{basic_conv2d.2} parent=27 // pred_region
        _
      $region44: #{basic_conv2d.2} parent=27 // pred_fallthru
        _
    $region28: #{basic_conv2d.2} parent=5 // pred_fallthru
      _
    %p939 = scmp.le.s32.totalorder 2, %s10
    // Predicated region
    $region45: #{basic_conv2d.2} parent=5 // pred_check
      %p940 = pneg %p939
    $region46: #{basic_conv2d.2} parent=5 // pred_check_branch
      %942 = sbr.rel (%p940) target = $region48
    $region47: #{basic_conv2d.2} parent=5 // pred_region
      %s943 = ssub.s32 %s10, 2
      // Predicated region
      $region49: #{basic_conv2d.2} parent=47 // pred_check
        %p944 = pneg %p105
      $region50: #{basic_conv2d.2} parent=47 // pred_check_branch
        %946 = sbr.rel (%p944) target = $region52
      $region51: #{basic_conv2d.2} parent=47 // pred_region
        %s947 = smul.u32 32, %s21
        %p948 = scmp.lt.s32.totalorder %s947, 63
        %s949 = scalar_select %p948, %s947, 63
        %s950 = smul.addr %s949, 8
        %s951 = scalar_lea.vmem %s2, %s950
      $region52: #{basic_conv2d.2} parent=47 // pred_fallthru
        _
      // Predicated region
      $region53: #{basic_conv2d.2} parent=47 // pred_check
        %p952 = pneg %p131
      $region54: #{basic_conv2d.2} parent=47 // pred_check_branch
        %954 = sbr.rel (%p952) target = $region56
      $region55: #{basic_conv2d.2} parent=47 // pred_region
        %p955 = scmp.lt.s32.totalorder %s21, 1
        %s956 = scalar_select %p955, %s21, 1
        %s957 = smul.addr %s956, 2
        %s958 = scalar_lea.vmem %s3, %s957
      $region56: #{basic_conv2d.2} parent=47 // pred_fallthru
        _
    $region48: #{basic_conv2d.2} parent=5 // pred_fallthru
      _
  $region6: #{basic_conv2d.2} parent=0 // loop_footer
    %s14 = sadd.s32 1, %s10
  $region7: #{basic_conv2d.2} parent=0 // loop_footer_branch
    %9 = sbr.rel target = $region3
  $region8: #{basic_conv2d.2} parent=0 // loop_exit
    _

</llo_original>
